<compile_context>
chip_gen: v7x
topology: tpu7x:2x2x1
jax: 0.10.0
libtpu: 0.0.40
codegen_flags: <defaults>
</compile_context>

<pallas_src>
import jax
import jax.numpy as jnp
from jax.experimental import pallas as pl
from jax.experimental.pallas import tpu as pltpu

EPS = 1e-5                     # nn.BatchNorm1d default eps
MXU_DTYPE = jnp.bfloat16       # MXU operand dtype (f32 accumulate); jnp.float32 for exact
PAD_MAX = 3                    # stem k=7 -> pad 3;  blocks k=3 -> pad 1


# --------------------------- weight preparation ------------------------------

def fold_bn(bn):
    gamma, beta, mean, var = bn
    scale = gamma / jnp.sqrt(var + EPS)
    shift = beta - mean * scale
    return scale, shift


def conv_w_to_mat(w_oik):
    """PyTorch Conv1d weight [C_out, C_in, K] -> GEMM weight [K*C_in, C_out]
    (tap-major, input-channel-minor rows)."""
    C_out, C_in, K = w_oik.shape
    return jnp.transpose(w_oik, (2, 1, 0)).reshape(K * C_in, C_out)


def prepare_inputs(params, B, L):
    """One-time prep: folded BN, GEMM-layout (bf16) conv weights, permuted linear
    weight, and the tiny 0/1 index-helper matrices used by the fused kernel."""
    C0 = params["conv1_w"].shape[0]
    blocks = params["blocks"]
    C_last = blocks[-1]["w1"].shape[0] if blocks else C0
    n_cls = params["linear_w"].shape[0]
    M = B * L
    z_dim = C_last * L

    # ---- index-helper constants (all tiny, 0/1-valued, built once) ----------
    m_idx = jnp.arange(M, dtype=jnp.int32)
    l_of_m = m_idx % L
    offs = jnp.arange(-PAD_MAX, PAD_MAX + 1, dtype=jnp.int32)
    pos = l_of_m[:, None] + offs[None, :]
    conv_masks = ((pos >= 0) & (pos < L)).astype(jnp.float32)                  # [M, 7]
    j = jnp.arange(z_dim, dtype=jnp.int32)
    rep = (j[None, :] % C_last ==
           jnp.arange(C_last, dtype=jnp.int32)[:, None]).astype(jnp.float32)   # [C_last, z_dim]
    gmask = (j[None, :] // C_last == l_of_m[:, None]).astype(jnp.float32)      # [M, z_dim]
    s2 = (m_idx[None, :] // L ==
          jnp.arange(B, dtype=jnp.int32)[:, None]).astype(jnp.float32)         # [B, M]
    flat = [conv_masks, rep, gmask, s2]

    # ---- stem (kept f32: C_in == 1 -> broadcast-multiply path, no MXU) ------
    s_scale, s_shift = fold_bn(params["bn1"])
    flat += [conv_w_to_mat(params["conv1_w"]).astype(jnp.float32),             # [7, C0]
             s_scale.reshape(1, C0), s_shift.reshape(1, C0)]

    # ---- residual blocks -----------------------------------------------------
    for blk in blocks:
        c_out = blk["w1"].shape[0]
        scale, shift = fold_bn(blk["bn1"])
        flat += [conv_w_to_mat(blk["w1"]).astype(MXU_DTYPE),                   # [3*C_in, C_out]
                 scale.reshape(1, c_out), shift.reshape(1, c_out)]
        if blk["shortcut"] is not None:
            sc_scale, sc_shift = fold_bn(blk["shortcut"]["bn"])
            flat += [conv_w_to_mat(blk["shortcut"]["w"]).astype(MXU_DTYPE),    # [C_in, C_out]
                     sc_scale.reshape(1, c_out), sc_shift.reshape(1, c_out)]

    # ---- final linear: permute weights so the kernel's (l-major, c-minor) lane
    #      order matches torch's channel-major x.view(B, -1) flatten -----------
    Wl = params["linear_w"]                                                    # [n_cls, C_last*L]
    w4 = (Wl.reshape(n_cls, C_last, L).transpose(2, 1, 0)
            .reshape(z_dim, n_cls)).astype(MXU_DTYPE)                          # [z_dim, n_cls]
    flat += [w4, params["linear_b"].reshape(1, n_cls)]
    return flat


# ------------------------------ fused kernel ---------------------------------

def _make_kernel(B, L, C0, block_cfg, C_last, n_cls):
    """block_cfg: tuple of (c_in, c_out, has_shortcut) per residual block."""
    M = B * L
    K_STEM, PAD_STEM = 7, 3
    K_BLK, PAD_BLK = 3, 1

    def kernel(*refs):
        *in_refs, out_ref = refs
        it = iter(in_refs)
        x_ref = next(it)            # [M, 1]            f32  channels-last input rows
        masks_ref = next(it)        # [M, 7]            f32  conv boundary masks (col = d+PAD_MAX)
        rep_ref = next(it)          # [C_last, L*C_last] f32 channel replication (0/1)
        gmask_ref = next(it)        # [M, L*C_last]     f32  row -> lane-group select (0/1)
        s2_ref = next(it)           # [B, M]            f32  per-batch row-sum selector (0/1)
        stem_w_ref = next(it)       # [7, C0]           f32
        stem_scale_ref = next(it)   # [1, C0]           f32  folded BN
        stem_shift_ref = next(it)   # [1, C0]           f32

        blk_refs = []
        for (_, _, has_sc) in block_cfg:
            w = next(it); bscale = next(it); bshift = next(it)
            if has_sc:
                blk_refs.append((w, bscale, bshift, next(it), next(it), next(it)))
            else:
                blk_refs.append((w, bscale, bshift, None, None, None))
        w4_ref = next(it)           # [L*C_last, n_cls] bf16  permuted linear weight
        bias_ref = next(it)         # [1, n_cls]        f32

        def shift_rows(v, d):
            # Row m receives v[m + d], with zeros wherever the source position
            # l + d falls outside [0, L) (== Conv1d zero padding).  Rows that
            # would wrap across batch boundaries fall exactly inside the masked
            # region, so a circular roll + mask is exact.
            if d == 0:
                return v
            rolled = pltpu.roll(v, (-d) % M, axis=0)
            return rolled * masks_ref[:, PAD_MAX + d:PAD_MAX + d + 1]

        # ---- stem: Conv1d(1, C0, k=7, pad=3) -> BN -> ReLU  (C_in==1 -> VPU only)
        xb = jnp.broadcast_to(x_ref[...], (M, C0))
        acc = jnp.zeros((M, C0), jnp.float32)
        for t in range(K_STEM):
            acc = acc + shift_rows(xb, t - PAD_STEM) * stem_w_ref[t:t + 1, :]
        h = jnp.maximum(acc * stem_scale_ref[...] + stem_shift_ref[...], 0.0)

        # ---- residual blocks: conv3 == 3 shifted bf16 MXU dots, f32 epilogue ----
        for (c_in, c_out, has_sc), (w_ref, bscale_ref, bshift_ref,
                                    scw_ref, scscale_ref, scshift_ref) in zip(block_cfg, blk_refs):
            if has_sc:   # 1x1 conv + BN shortcut
                res = (jnp.dot(h.astype(MXU_DTYPE), scw_ref[...],
                               preferred_element_type=jnp.float32)
                       * scscale_ref[...] + scshift_ref[...])
            else:
                res = h
            acc = jnp.zeros((M, c_out), jnp.float32)
            for t in range(K_BLK):
                xt = shift_rows(h, t - PAD_BLK)
                wt = w_ref[t * c_in:(t + 1) * c_in, :]
                acc = acc + jnp.dot(xt.astype(MXU_DTYPE), wt,
                                    preferred_element_type=jnp.float32)
            h = jnp.maximum(acc * bscale_ref[...] + bshift_ref[...] + res, 0.0)

        # ---- torch channel-major flatten + Linear, expressed as plain 2-D matmuls
        # (no in-kernel reshape/transpose needed):
        #   xexp[m, l*C + c] = h[m, c] * (l == m % L)
        #   z[b,    l*C + c] = h[b*L + l, c]     (the permutation vs. torch's
        #                                         c*L + l order is folded into w4)
        xexp = jnp.dot(h, rep_ref[...], preferred_element_type=jnp.float32) * gmask_ref[...]
        z = jnp.dot(s2_ref[...], xexp, preferred_element_type=jnp.float32)      # [B, L*C_last]
        out_ref[...] = (jnp.dot(z.astype(MXU_DTYPE), w4_ref[...],
                                preferred_element_type=jnp.float32) + bias_ref[...])

    return kernel


def build_forward(params, B, L):
    """Prepares weights once and returns forward(x_ncl) -> logits, backed by a
    single fused Pallas kernel (under jax.jit)."""
    C0 = params["conv1_w"].shape[0]
    block_cfg = tuple((blk["w1"].shape[1], blk["w1"].shape[0], blk["shortcut"] is not None)
                      for blk in params["blocks"])
    C_last = block_cfg[-1][1] if block_cfg else C0
    n_cls = params["linear_w"].shape[0]
    M = B * L

    flat_inputs = prepare_inputs(params, B, L)
    kernel = _make_kernel(B, L, C0, block_cfg, C_last, n_cls)
    n_in = 1 + len(flat_inputs)

    fused = pl.pallas_call(
        kernel,
        out_shape=jax.ShapeDtypeStruct((B, n_cls), jnp.float32),
        in_specs=[pl.BlockSpec(memory_space=pltpu.MemorySpace.VMEM)] * n_in,
        out_specs=pl.BlockSpec(memory_space=pltpu.MemorySpace.VMEM),
        compiler_params=pltpu.CompilerParams(vmem_limit_bytes=32 * 1024 * 1024),
    )

    @jax.jit
    def _forward(x_ncl, *weights):
        # NCL -> channels-last rows [B*L, 1]; C_in == 1 so this is layout-only.
        x2d = jnp.transpose(x_ncl, (0, 2, 1)).reshape(M, 1).astype(jnp.float32)
        return fused(x2d, *weights)

    return lambda x_ncl: _forward(x_ncl, *flat_inputs)


# --------------------------- parameter creation ------------------------------

def _randn(key, shape, std=0.1):
    return std * jax.random.normal(key, shape, dtype=jnp.float32)


def make_bn(key, c):
    k1, k2, k3, k4 = jax.random.split(key, 4)
    gamma = 1.0 + _randn(k1, (c,))
    beta = _randn(k2, (c,))
    mean = _randn(k3, (c,))
    var = jnp.abs(_randn(k4, (c,))) + 0.5
    return (gamma, beta, mean, var)


def init_params(key, hidden_sizes, num_blocks, input_dim, in_channels, n_classes):
    keys = iter(jax.random.split(key, 256))
    params = {}
    params["conv1_w"] = _randn(next(keys), (in_channels, 1, 7))
    params["bn1"] = make_bn(next(keys), in_channels)

    blocks = []
    cur_c = in_channels
    strides = [1] + [1] * (len(hidden_sizes) - 1)   # all strides are 1 in the module
    for hs, nb, st in zip(hidden_sizes, num_blocks, strides):
        blk_strides = [st] + [1] * (nb - 1)
        for s in blk_strides:
            blk = {
                "w1": _randn(next(keys), (hs, cur_c, 3)),
                "bn1": make_bn(next(keys), hs),
                "shortcut": None,
            }
            if s != 1 or cur_c != hs:
                blk["shortcut"] = {
                    "w": _randn(next(keys), (hs, cur_c, 1)),
                    "bn": make_bn(next(keys), hs),
                }
            blocks.append(blk)
            cur_c = hs
    params["blocks"] = blocks

    z_dim = cur_c * input_dim  # all strides == 1 -> length preserved
    params["linear_w"] = _randn(next(keys), (n_classes, z_dim))
    params["linear_b"] = _randn(next(keys), (n_classes,))
    return params


# ----------------------------- pure-JAX reference ----------------------------

def _conv1d_ref(x_ncl, w, pad):
    return jax.lax.conv_general_dilated(
        x_ncl, w, window_strides=(1,), padding=[(pad, pad)],
        dimension_numbers=("NCH", "OIH", "NCH"))


def _bn_ref(x_ncl, bn):
    scale, shift = fold_bn(bn)
    return x_ncl * scale[None, :, None] + shift[None, :, None]


def forward_ref(params, x_ncl):
    h = jax.nn.relu(_bn_ref(_conv1d_ref(x_ncl, params["conv1_w"], 3), params["bn1"]))
    for blk in params["blocks"]:
        out = _bn_ref(_conv1d_ref(h, blk["w1"], 1), blk["bn1"])
        if blk["shortcut"] is None:
            sc = h
        else:
            sc = _bn_ref(_conv1d_ref(h, blk["shortcut"]["w"], 0), blk["shortcut"]["bn"])
        h = jax.nn.relu(out + sc)
    z = h.reshape(h.shape[0], -1)
    return z @ params["linear_w"].T + params["linear_b"]


# ---------------------------------- main --------------------------------------

if __name__ == "__main__":
    # small config consistent with the module's constructor
    hidden_sizes = [8, 16]
    num_blocks = [1, 2]
    input_dim = 16
    in_channels = 8
    n_classes = 5
    batch = 2

    key = jax.random.PRNGKey(0)
    k_params, k_x = jax.random.split(key)
    params = init_params(k_params, hidden_sizes, num_blocks,
                         input_dim, in_channels, n_classes)

    x = jax.random.normal(k_x, (batch, 1, input_dim), dtype=jnp.float32)  # NCL

    forward = build_forward(params, batch, input_dim)
    logits = forward(x)
    jax.block_until_ready(logits)

    ref = forward_ref(params, x)
    # bf16 MXU operands are a deliberate precision trade (f32 accumulate/epilogue);
    # with MXU_DTYPE = jnp.float32 the kernel matches the f32 reference to 1e-4.
    tol = 5e-2 if MXU_DTYPE == jnp.bfloat16 else 1e-4
    assert logits.shape == (batch, n_classes)
    assert jnp.allclose(logits, ref, atol=tol, rtol=tol), (
        f"mismatch: max abs err = {jnp.max(jnp.abs(logits - ref))}")

    print("KERNEL_OK")
</pallas_src>

<mosaic_0001>
module attributes {stable_mosaic.version = 11 : i64} {
  func.func @kernel(%arg0: memref<32x1xf32, #tpu.memory_space<vmem>>, %arg1: memref<32x7xf32, #tpu.memory_space<vmem>>, %arg2: memref<16x256xf32, #tpu.memory_space<vmem>>, %arg3: memref<32x256xf32, #tpu.memory_space<vmem>>, %arg4: memref<2x32xf32, #tpu.memory_space<vmem>>, %arg5: memref<7x8xf32, #tpu.memory_space<vmem>>, %arg6: memref<1x8xf32, #tpu.memory_space<vmem>>, %arg7: memref<1x8xf32, #tpu.memory_space<vmem>>, %arg8: memref<24x8xbf16, #tpu.memory_space<vmem>>, %arg9: memref<1x8xf32, #tpu.memory_space<vmem>>, %arg10: memref<1x8xf32, #tpu.memory_space<vmem>>, %arg11: memref<24x16xbf16, #tpu.memory_space<vmem>>, %arg12: memref<1x16xf32, #tpu.memory_space<vmem>>, %arg13: memref<1x16xf32, #tpu.memory_space<vmem>>, %arg14: memref<8x16xbf16, #tpu.memory_space<vmem>>, %arg15: memref<1x16xf32, #tpu.memory_space<vmem>>, %arg16: memref<1x16xf32, #tpu.memory_space<vmem>>, %arg17: memref<48x16xbf16, #tpu.memory_space<vmem>>, %arg18: memref<1x16xf32, #tpu.memory_space<vmem>>, %arg19: memref<1x16xf32, #tpu.memory_space<vmem>>, %arg20: memref<256x5xbf16, #tpu.memory_space<vmem>>, %arg21: memref<1x5xf32, #tpu.memory_space<vmem>>, %arg22: memref<2x5xf32, #tpu.memory_space<vmem>>) attributes {dimension_semantics = [], scalar_prefetch = 0 : i64, scratch_operands = 0 : i64, tpu.core_type = #tpu.core_type<tc>} {
    %c0 = arith.constant 0 : index
    %c0_0 = arith.constant 0 : index
    %0 = vector.load %arg0[%c0, %c0_0] : memref<32x1xf32, #tpu.memory_space<vmem>>, vector<32x1xf32>
    %1 = vector.shape_cast %0 : vector<32x1xf32> to vector<32x1xf32>
    %2 = vector.broadcast %1 : vector<32x1xf32> to vector<32x8xf32>
    %cst = arith.constant 0.000000e+00 : f32
    %3 = vector.broadcast %cst : f32 to vector<32x8xf32>
    %c3_i32 = arith.constant 3 : i32
    %4 = tpu.dynamic_rotate %2 by %c3_i32 dim 0 : vector<32x8xf32>, i32 -> vector<32x8xf32>
    %c0_1 = arith.constant 0 : index
    %c0_2 = arith.constant 0 : index
    %5 = vector.load %arg1[%c0_1, %c0_2] : memref<32x7xf32, #tpu.memory_space<vmem>>, vector<32x1xf32>
    %6 = vector.broadcast %5 : vector<32x1xf32> to vector<32x8xf32>
    %7 = arith.mulf %4, %6 : vector<32x8xf32>
    %c0_3 = arith.constant 0 : index
    %c0_4 = arith.constant 0 : index
    %8 = vector.load %arg5[%c0_3, %c0_4] : memref<7x8xf32, #tpu.memory_space<vmem>>, vector<1x8xf32>
    %9 = vector.broadcast %8 : vector<1x8xf32> to vector<32x8xf32>
    %10 = arith.mulf %7, %9 : vector<32x8xf32>
    %11 = arith.addf %3, %10 : vector<32x8xf32>
    %c2_i32 = arith.constant 2 : i32
    %12 = tpu.dynamic_rotate %2 by %c2_i32 dim 0 : vector<32x8xf32>, i32 -> vector<32x8xf32>
    %c0_5 = arith.constant 0 : index
    %c1 = arith.constant 1 : index
    %13 = vector.load %arg1[%c0_5, %c1] : memref<32x7xf32, #tpu.memory_space<vmem>>, vector<32x1xf32>
    %14 = vector.broadcast %13 : vector<32x1xf32> to vector<32x8xf32>
    %15 = arith.mulf %12, %14 : vector<32x8xf32>
    %c1_6 = arith.constant 1 : index
    %c0_7 = arith.constant 0 : index
    %16 = vector.load %arg5[%c1_6, %c0_7] : memref<7x8xf32, #tpu.memory_space<vmem>>, vector<1x8xf32>
    %17 = vector.broadcast %16 : vector<1x8xf32> to vector<32x8xf32>
    %18 = arith.mulf %15, %17 : vector<32x8xf32>
    %19 = arith.addf %11, %18 : vector<32x8xf32>
    %c1_i32 = arith.constant 1 : i32
    %20 = tpu.dynamic_rotate %2 by %c1_i32 dim 0 : vector<32x8xf32>, i32 -> vector<32x8xf32>
    %c0_8 = arith.constant 0 : index
    %c2 = arith.constant 2 : index
    %21 = vector.load %arg1[%c0_8, %c2] : memref<32x7xf32, #tpu.memory_space<vmem>>, vector<32x1xf32>
    %22 = vector.broadcast %21 : vector<32x1xf32> to vector<32x8xf32>
    %23 = arith.mulf %20, %22 : vector<32x8xf32>
    %c2_9 = arith.constant 2 : index
    %c0_10 = arith.constant 0 : index
    %24 = vector.load %arg5[%c2_9, %c0_10] : memref<7x8xf32, #tpu.memory_space<vmem>>, vector<1x8xf32>
    %25 = vector.broadcast %24 : vector<1x8xf32> to vector<32x8xf32>
    %26 = arith.mulf %23, %25 : vector<32x8xf32>
    %27 = arith.addf %19, %26 : vector<32x8xf32>
    %c3 = arith.constant 3 : index
    %c0_11 = arith.constant 0 : index
    %28 = vector.load %arg5[%c3, %c0_11] : memref<7x8xf32, #tpu.memory_space<vmem>>, vector<1x8xf32>
    %29 = vector.broadcast %28 : vector<1x8xf32> to vector<32x8xf32>
    %30 = arith.mulf %2, %29 : vector<32x8xf32>
    %31 = arith.addf %27, %30 : vector<32x8xf32>
    %c31_i32 = arith.constant 31 : i32
    %32 = tpu.dynamic_rotate %2 by %c31_i32 dim 0 : vector<32x8xf32>, i32 -> vector<32x8xf32>
    %c0_12 = arith.constant 0 : index
    %c4 = arith.constant 4 : index
    %33 = vector.load %arg1[%c0_12, %c4] : memref<32x7xf32, #tpu.memory_space<vmem>>, vector<32x1xf32>
    %34 = vector.broadcast %33 : vector<32x1xf32> to vector<32x8xf32>
    %35 = arith.mulf %32, %34 : vector<32x8xf32>
    %c4_13 = arith.constant 4 : index
    %c0_14 = arith.constant 0 : index
    %36 = vector.load %arg5[%c4_13, %c0_14] : memref<7x8xf32, #tpu.memory_space<vmem>>, vector<1x8xf32>
    %37 = vector.broadcast %36 : vector<1x8xf32> to vector<32x8xf32>
    %38 = arith.mulf %35, %37 : vector<32x8xf32>
    %39 = arith.addf %31, %38 : vector<32x8xf32>
    %c30_i32 = arith.constant 30 : i32
    %40 = tpu.dynamic_rotate %2 by %c30_i32 dim 0 : vector<32x8xf32>, i32 -> vector<32x8xf32>
    %c0_15 = arith.constant 0 : index
    %c5 = arith.constant 5 : index
    %41 = vector.load %arg1[%c0_15, %c5] : memref<32x7xf32, #tpu.memory_space<vmem>>, vector<32x1xf32>
    %42 = vector.broadcast %41 : vector<32x1xf32> to vector<32x8xf32>
    %43 = arith.mulf %40, %42 : vector<32x8xf32>
    %c5_16 = arith.constant 5 : index
    %c0_17 = arith.constant 0 : index
    %44 = vector.load %arg5[%c5_16, %c0_17] : memref<7x8xf32, #tpu.memory_space<vmem>>, vector<1x8xf32>
    %45 = vector.broadcast %44 : vector<1x8xf32> to vector<32x8xf32>
    %46 = arith.mulf %43, %45 : vector<32x8xf32>
    %47 = arith.addf %39, %46 : vector<32x8xf32>
    %c29_i32 = arith.constant 29 : i32
    %48 = tpu.dynamic_rotate %2 by %c29_i32 dim 0 : vector<32x8xf32>, i32 -> vector<32x8xf32>
    %c0_18 = arith.constant 0 : index
    %c6 = arith.constant 6 : index
    %49 = vector.load %arg1[%c0_18, %c6] : memref<32x7xf32, #tpu.memory_space<vmem>>, vector<32x1xf32>
    %50 = vector.broadcast %49 : vector<32x1xf32> to vector<32x8xf32>
    %51 = arith.mulf %48, %50 : vector<32x8xf32>
    %c6_19 = arith.constant 6 : index
    %c0_20 = arith.constant 0 : index
    %52 = vector.load %arg5[%c6_19, %c0_20] : memref<7x8xf32, #tpu.memory_space<vmem>>, vector<1x8xf32>
    %53 = vector.broadcast %52 : vector<1x8xf32> to vector<32x8xf32>
    %54 = arith.mulf %51, %53 : vector<32x8xf32>
    %55 = arith.addf %47, %54 : vector<32x8xf32>
    %c0_21 = arith.constant 0 : index
    %c0_22 = arith.constant 0 : index
    %56 = vector.load %arg6[%c0_21, %c0_22] : memref<1x8xf32, #tpu.memory_space<vmem>>, vector<1x8xf32>
    %57 = vector.broadcast %56 : vector<1x8xf32> to vector<32x8xf32>
    %58 = arith.mulf %55, %57 : vector<32x8xf32>
    %c0_23 = arith.constant 0 : index
    %c0_24 = arith.constant 0 : index
    %59 = vector.load %arg7[%c0_23, %c0_24] : memref<1x8xf32, #tpu.memory_space<vmem>>, vector<1x8xf32>
    %60 = vector.broadcast %59 : vector<1x8xf32> to vector<32x8xf32>
    %61 = arith.addf %58, %60 : vector<32x8xf32>
    %cst_25 = arith.constant 0.000000e+00 : f32
    %62 = vector.broadcast %cst_25 : f32 to vector<32x8xf32>
    %63 = arith.maximumf %61, %62 : vector<32x8xf32>
    %cst_26 = arith.constant 0.000000e+00 : f32
    %64 = vector.broadcast %cst_26 : f32 to vector<32x8xf32>
    %c1_i32_27 = arith.constant 1 : i32
    %65 = tpu.dynamic_rotate %63 by %c1_i32_27 dim 0 : vector<32x8xf32>, i32 -> vector<32x8xf32>
    %c0_28 = arith.constant 0 : index
    %c2_29 = arith.constant 2 : index
    %66 = vector.load %arg1[%c0_28, %c2_29] : memref<32x7xf32, #tpu.memory_space<vmem>>, vector<32x1xf32>
    %67 = vector.broadcast %66 : vector<32x1xf32> to vector<32x8xf32>
    %68 = arith.mulf %65, %67 : vector<32x8xf32>
    %c0_30 = arith.constant 0 : index
    %c0_31 = arith.constant 0 : index
    %69 = vector.load %arg8[%c0_30, %c0_31] : memref<24x8xbf16, #tpu.memory_space<vmem>>, vector<8x8xbf16>
    %70 = arith.truncf %68 : vector<32x8xf32> to vector<32x8xbf16>
    %cst_32 = arith.constant dense<0.000000e+00> : vector<32x8xf32>
    %71 = tpu.matmul %70, %69, %cst_32 {dimension_numbers = #tpu.dot_dimension_numbers<[1], [0], [0], [1], [0, 0, 1, 1], [], []>} : vector<32x8xbf16>, vector<8x8xbf16>, vector<32x8xf32> -> vector<32x8xf32>
    %72 = arith.addf %64, %71 : vector<32x8xf32>
    %c8 = arith.constant 8 : index
    %c0_33 = arith.constant 0 : index
    %73 = vector.load %arg8[%c8, %c0_33] : memref<24x8xbf16, #tpu.memory_space<vmem>>, vector<8x8xbf16>
    %74 = arith.truncf %63 : vector<32x8xf32> to vector<32x8xbf16>
    %cst_34 = arith.constant dense<0.000000e+00> : vector<32x8xf32>
    %75 = tpu.matmul %74, %73, %cst_34 {dimension_numbers = #tpu.dot_dimension_numbers<[1], [0], [0], [1], [0, 0, 1, 1], [], []>} : vector<32x8xbf16>, vector<8x8xbf16>, vector<32x8xf32> -> vector<32x8xf32>
    %76 = arith.addf %72, %75 : vector<32x8xf32>
    %c31_i32_35 = arith.constant 31 : i32
    %77 = tpu.dynamic_rotate %63 by %c31_i32_35 dim 0 : vector<32x8xf32>, i32 -> vector<32x8xf32>
    %c0_36 = arith.constant 0 : index
    %c4_37 = arith.constant 4 : index
    %78 = vector.load %arg1[%c0_36, %c4_37] : memref<32x7xf32, #tpu.memory_space<vmem>>, vector<32x1xf32>
    %79 = vector.broadcast %78 : vector<32x1xf32> to vector<32x8xf32>
    %80 = arith.mulf %77, %79 : vector<32x8xf32>
    %c16 = arith.constant 16 : index
    %c0_38 = arith.constant 0 : index
    %81 = vector.load %arg8[%c16, %c0_38] : memref<24x8xbf16, #tpu.memory_space<vmem>>, vector<8x8xbf16>
    %82 = arith.truncf %80 : vector<32x8xf32> to vector<32x8xbf16>
    %cst_39 = arith.constant dense<0.000000e+00> : vector<32x8xf32>
    %83 = tpu.matmul %82, %81, %cst_39 {dimension_numbers = #tpu.dot_dimension_numbers<[1], [0], [0], [1], [0, 0, 1, 1], [], []>} : vector<32x8xbf16>, vector<8x8xbf16>, vector<32x8xf32> -> vector<32x8xf32>
    %84 = arith.addf %76, %83 : vector<32x8xf32>
    %c0_40 = arith.constant 0 : index
    %c0_41 = arith.constant 0 : index
    %85 = vector.load %arg9[%c0_40, %c0_41] : memref<1x8xf32, #tpu.memory_space<vmem>>, vector<1x8xf32>
    %86 = vector.broadcast %85 : vector<1x8xf32> to vector<32x8xf32>
    %87 = arith.mulf %84, %86 : vector<32x8xf32>
    %c0_42 = arith.constant 0 : index
    %c0_43 = arith.constant 0 : index
    %88 = vector.load %arg10[%c0_42, %c0_43] : memref<1x8xf32, #tpu.memory_space<vmem>>, vector<1x8xf32>
    %89 = vector.broadcast %88 : vector<1x8xf32> to vector<32x8xf32>
    %90 = arith.addf %87, %89 : vector<32x8xf32>
    %91 = arith.addf %90, %63 : vector<32x8xf32>
    %cst_44 = arith.constant 0.000000e+00 : f32
    %92 = vector.broadcast %cst_44 : f32 to vector<32x8xf32>
    %93 = arith.maximumf %91, %92 : vector<32x8xf32>
    %94 = arith.truncf %93 : vector<32x8xf32> to vector<32x8xbf16>
    %c0_45 = arith.constant 0 : index
    %c0_46 = arith.constant 0 : index
    %95 = vector.load %arg14[%c0_45, %c0_46] : memref<8x16xbf16, #tpu.memory_space<vmem>>, vector<8x16xbf16>
    %cst_47 = arith.constant dense<0.000000e+00> : vector<32x16xf32>
    %96 = tpu.matmul %94, %95, %cst_47 {dimension_numbers = #tpu.dot_dimension_numbers<[1], [0], [0], [1], [0, 0, 1, 1], [], []>} : vector<32x8xbf16>, vector<8x16xbf16>, vector<32x16xf32> -> vector<32x16xf32>
    %c0_48 = arith.constant 0 : index
    %c0_49 = arith.constant 0 : index
    %97 = vector.load %arg15[%c0_48, %c0_49] : memref<1x16xf32, #tpu.memory_space<vmem>>, vector<1x16xf32>
    %98 = vector.broadcast %97 : vector<1x16xf32> to vector<32x16xf32>
    %99 = arith.mulf %96, %98 : vector<32x16xf32>
    %c0_50 = arith.constant 0 : index
    %c0_51 = arith.constant 0 : index
    %100 = vector.load %arg16[%c0_50, %c0_51] : memref<1x16xf32, #tpu.memory_space<vmem>>, vector<1x16xf32>
    %101 = vector.broadcast %100 : vector<1x16xf32> to vector<32x16xf32>
    %102 = arith.addf %99, %101 : vector<32x16xf32>
    %cst_52 = arith.constant 0.000000e+00 : f32
    %103 = vector.broadcast %cst_52 : f32 to vector<32x16xf32>
    %c1_i32_53 = arith.constant 1 : i32
    %104 = tpu.dynamic_rotate %93 by %c1_i32_53 dim 0 : vector<32x8xf32>, i32 -> vector<32x8xf32>
    %c0_54 = arith.constant 0 : index
    %c2_55 = arith.constant 2 : index
    %105 = vector.load %arg1[%c0_54, %c2_55] : memref<32x7xf32, #tpu.memory_space<vmem>>, vector<32x1xf32>
    %106 = vector.broadcast %105 : vector<32x1xf32> to vector<32x8xf32>
    %107 = arith.mulf %104, %106 : vector<32x8xf32>
    %c0_56 = arith.constant 0 : index
    %c0_57 = arith.constant 0 : index
    %108 = vector.load %arg11[%c0_56, %c0_57] : memref<24x16xbf16, #tpu.memory_space<vmem>>, vector<8x16xbf16>
    %109 = arith.truncf %107 : vector<32x8xf32> to vector<32x8xbf16>
    %cst_58 = arith.constant dense<0.000000e+00> : vector<32x16xf32>
    %110 = tpu.matmul %109, %108, %cst_58 {dimension_numbers = #tpu.dot_dimension_numbers<[1], [0], [0], [1], [0, 0, 1, 1], [], []>} : vector<32x8xbf16>, vector<8x16xbf16>, vector<32x16xf32> -> vector<32x16xf32>
    %111 = arith.addf %103, %110 : vector<32x16xf32>
    %c8_59 = arith.constant 8 : index
    %c0_60 = arith.constant 0 : index
    %112 = vector.load %arg11[%c8_59, %c0_60] : memref<24x16xbf16, #tpu.memory_space<vmem>>, vector<8x16xbf16>
    %113 = arith.truncf %93 : vector<32x8xf32> to vector<32x8xbf16>
    %cst_61 = arith.constant dense<0.000000e+00> : vector<32x16xf32>
    %114 = tpu.matmul %113, %112, %cst_61 {dimension_numbers = #tpu.dot_dimension_numbers<[1], [0], [0], [1], [0, 0, 1, 1], [], []>} : vector<32x8xbf16>, vector<8x16xbf16>, vector<32x16xf32> -> vector<32x16xf32>
    %115 = arith.addf %111, %114 : vector<32x16xf32>
    %c31_i32_62 = arith.constant 31 : i32
    %116 = tpu.dynamic_rotate %93 by %c31_i32_62 dim 0 : vector<32x8xf32>, i32 -> vector<32x8xf32>
    %c0_63 = arith.constant 0 : index
    %c4_64 = arith.constant 4 : index
    %117 = vector.load %arg1[%c0_63, %c4_64] : memref<32x7xf32, #tpu.memory_space<vmem>>, vector<32x1xf32>
    %118 = vector.broadcast %117 : vector<32x1xf32> to vector<32x8xf32>
    %119 = arith.mulf %116, %118 : vector<32x8xf32>
    %c16_65 = arith.constant 16 : index
    %c0_66 = arith.constant 0 : index
    %120 = vector.load %arg11[%c16_65, %c0_66] : memref<24x16xbf16, #tpu.memory_space<vmem>>, vector<8x16xbf16>
    %121 = arith.truncf %119 : vector<32x8xf32> to vector<32x8xbf16>
    %cst_67 = arith.constant dense<0.000000e+00> : vector<32x16xf32>
    %122 = tpu.matmul %121, %120, %cst_67 {dimension_numbers = #tpu.dot_dimension_numbers<[1], [0], [0], [1], [0, 0, 1, 1], [], []>} : vector<32x8xbf16>, vector<8x16xbf16>, vector<32x16xf32> -> vector<32x16xf32>
    %123 = arith.addf %115, %122 : vector<32x16xf32>
    %c0_68 = arith.constant 0 : index
    %c0_69 = arith.constant 0 : index
    %124 = vector.load %arg12[%c0_68, %c0_69] : memref<1x16xf32, #tpu.memory_space<vmem>>, vector<1x16xf32>
    %125 = vector.broadcast %124 : vector<1x16xf32> to vector<32x16xf32>
    %126 = arith.mulf %123, %125 : vector<32x16xf32>
    %c0_70 = arith.constant 0 : index
    %c0_71 = arith.constant 0 : index
    %127 = vector.load %arg13[%c0_70, %c0_71] : memref<1x16xf32, #tpu.memory_space<vmem>>, vector<1x16xf32>
    %128 = vector.broadcast %127 : vector<1x16xf32> to vector<32x16xf32>
    %129 = arith.addf %126, %128 : vector<32x16xf32>
    %130 = arith.addf %129, %102 : vector<32x16xf32>
    %cst_72 = arith.constant 0.000000e+00 : f32
    %131 = vector.broadcast %cst_72 : f32 to vector<32x16xf32>
    %132 = arith.maximumf %130, %131 : vector<32x16xf32>
    %cst_73 = arith.constant 0.000000e+00 : f32
    %133 = vector.broadcast %cst_73 : f32 to vector<32x16xf32>
    %c1_i32_74 = arith.constant 1 : i32
    %134 = tpu.dynamic_rotate %132 by %c1_i32_74 dim 0 : vector<32x16xf32>, i32 -> vector<32x16xf32>
    %c0_75 = arith.constant 0 : index
    %c2_76 = arith.constant 2 : index
    %135 = vector.load %arg1[%c0_75, %c2_76] : memref<32x7xf32, #tpu.memory_space<vmem>>, vector<32x1xf32>
    %136 = vector.broadcast %135 : vector<32x1xf32> to vector<32x16xf32>
    %137 = arith.mulf %134, %136 : vector<32x16xf32>
    %c0_77 = arith.constant 0 : index
    %c0_78 = arith.constant 0 : index
    %138 = vector.load %arg17[%c0_77, %c0_78] : memref<48x16xbf16, #tpu.memory_space<vmem>>, vector<16x16xbf16>
    %139 = arith.truncf %137 : vector<32x16xf32> to vector<32x16xbf16>
    %cst_79 = arith.constant dense<0.000000e+00> : vector<32x16xf32>
    %140 = tpu.matmul %139, %138, %cst_79 {dimension_numbers = #tpu.dot_dimension_numbers<[1], [0], [0], [1], [0, 0, 1, 1], [], []>} : vector<32x16xbf16>, vector<16x16xbf16>, vector<32x16xf32> -> vector<32x16xf32>
    %141 = arith.addf %133, %140 : vector<32x16xf32>
    %c16_80 = arith.constant 16 : index
    %c0_81 = arith.constant 0 : index
    %142 = vector.load %arg17[%c16_80, %c0_81] : memref<48x16xbf16, #tpu.memory_space<vmem>>, vector<16x16xbf16>
    %143 = arith.truncf %132 : vector<32x16xf32> to vector<32x16xbf16>
    %cst_82 = arith.constant dense<0.000000e+00> : vector<32x16xf32>
    %144 = tpu.matmul %143, %142, %cst_82 {dimension_numbers = #tpu.dot_dimension_numbers<[1], [0], [0], [1], [0, 0, 1, 1], [], []>} : vector<32x16xbf16>, vector<16x16xbf16>, vector<32x16xf32> -> vector<32x16xf32>
    %145 = arith.addf %141, %144 : vector<32x16xf32>
    %c31_i32_83 = arith.constant 31 : i32
    %146 = tpu.dynamic_rotate %132 by %c31_i32_83 dim 0 : vector<32x16xf32>, i32 -> vector<32x16xf32>
    %c0_84 = arith.constant 0 : index
    %c4_85 = arith.constant 4 : index
    %147 = vector.load %arg1[%c0_84, %c4_85] : memref<32x7xf32, #tpu.memory_space<vmem>>, vector<32x1xf32>
    %148 = vector.broadcast %147 : vector<32x1xf32> to vector<32x16xf32>
    %149 = arith.mulf %146, %148 : vector<32x16xf32>
    %c32 = arith.constant 32 : index
    %c0_86 = arith.constant 0 : index
    %150 = vector.load %arg17[%c32, %c0_86] : memref<48x16xbf16, #tpu.memory_space<vmem>>, vector<16x16xbf16>
    %151 = arith.truncf %149 : vector<32x16xf32> to vector<32x16xbf16>
    %cst_87 = arith.constant dense<0.000000e+00> : vector<32x16xf32>
    %152 = tpu.matmul %151, %150, %cst_87 {dimension_numbers = #tpu.dot_dimension_numbers<[1], [0], [0], [1], [0, 0, 1, 1], [], []>} : vector<32x16xbf16>, vector<16x16xbf16>, vector<32x16xf32> -> vector<32x16xf32>
    %153 = arith.addf %145, %152 : vector<32x16xf32>
    %c0_88 = arith.constant 0 : index
    %c0_89 = arith.constant 0 : index
    %154 = vector.load %arg18[%c0_88, %c0_89] : memref<1x16xf32, #tpu.memory_space<vmem>>, vector<1x16xf32>
    %155 = vector.broadcast %154 : vector<1x16xf32> to vector<32x16xf32>
    %156 = arith.mulf %153, %155 : vector<32x16xf32>
    %c0_90 = arith.constant 0 : index
    %c0_91 = arith.constant 0 : index
    %157 = vector.load %arg19[%c0_90, %c0_91] : memref<1x16xf32, #tpu.memory_space<vmem>>, vector<1x16xf32>
    %158 = vector.broadcast %157 : vector<1x16xf32> to vector<32x16xf32>
    %159 = arith.addf %156, %158 : vector<32x16xf32>
    %160 = arith.addf %159, %132 : vector<32x16xf32>
    %cst_92 = arith.constant 0.000000e+00 : f32
    %161 = vector.broadcast %cst_92 : f32 to vector<32x16xf32>
    %162 = arith.maximumf %160, %161 : vector<32x16xf32>
    %c0_93 = arith.constant 0 : index
    %c0_94 = arith.constant 0 : index
    %163 = vector.load %arg2[%c0_93, %c0_94] : memref<16x256xf32, #tpu.memory_space<vmem>>, vector<16x256xf32>
    %cst_95 = arith.constant dense<0.000000e+00> : vector<32x256xf32>
    %164 = tpu.matmul %162, %163, %cst_95 {dimension_numbers = #tpu.dot_dimension_numbers<[1], [0], [0], [1], [0, 0, 1, 1], [], []>} : vector<32x16xf32>, vector<16x256xf32>, vector<32x256xf32> -> vector<32x256xf32>
    %c0_96 = arith.constant 0 : index
    %c0_97 = arith.constant 0 : index
    %165 = vector.load %arg3[%c0_96, %c0_97] : memref<32x256xf32, #tpu.memory_space<vmem>>, vector<32x256xf32>
    %166 = arith.mulf %164, %165 : vector<32x256xf32>
    %c0_98 = arith.constant 0 : index
    %c0_99 = arith.constant 0 : index
    %167 = vector.load %arg4[%c0_98, %c0_99] : memref<2x32xf32, #tpu.memory_space<vmem>>, vector<2x32xf32>
    %cst_100 = arith.constant dense<0.000000e+00> : vector<2x256xf32>
    %168 = tpu.matmul %167, %166, %cst_100 {dimension_numbers = #tpu.dot_dimension_numbers<[1], [0], [0], [1], [0, 0, 1, 1], [], []>} : vector<2x32xf32>, vector<32x256xf32>, vector<2x256xf32> -> vector<2x256xf32>
    %169 = arith.truncf %168 : vector<2x256xf32> to vector<2x256xbf16>
    %c0_101 = arith.constant 0 : index
    %c0_102 = arith.constant 0 : index
    %170 = vector.load %arg20[%c0_101, %c0_102] : memref<256x5xbf16, #tpu.memory_space<vmem>>, vector<256x5xbf16>
    %cst_103 = arith.constant dense<0.000000e+00> : vector<2x5xf32>
    %171 = tpu.matmul %169, %170, %cst_103 {dimension_numbers = #tpu.dot_dimension_numbers<[1], [0], [0], [1], [0, 0, 1, 1], [], []>} : vector<2x256xbf16>, vector<256x5xbf16>, vector<2x5xf32> -> vector<2x5xf32>
    %c0_104 = arith.constant 0 : index
    %c0_105 = arith.constant 0 : index
    %172 = vector.load %arg21[%c0_104, %c0_105] : memref<1x5xf32, #tpu.memory_space<vmem>>, vector<1x5xf32>
    %173 = vector.broadcast %172 : vector<1x5xf32> to vector<2x5xf32>
    %174 = arith.addf %171, %173 : vector<2x5xf32>
    %c0_106 = arith.constant 0 : index
    %c0_107 = arith.constant 0 : index
    %175 = vector.load %arg22[%c0_106, %c0_107] : memref<2x5xf32, #tpu.memory_space<vmem>>, vector<2x5xf32>
    tpu.vector_store %arg22[%c0_106, %c0_107], %174 {strides = array<i32>} : memref<2x5xf32, #tpu.memory_space<vmem>>, vector<2x5xf32>,
    return
  }
}

</mosaic_0001>

<llo_original>
// kernel: _forward.1
$region0: #{_forward.1}
  #allocation0 [shape = 'u32[]', space=smem, size = 0x4, offset = 0x4, fixed_abs, tag = 'smem constant byte address 0x4 - core index']
  #allocation1 [shape = 'u32[144,128]{1,0:T(1,128)}', space=vmem, size = 0x12000, scoped, tag = 'internal scratch']
  %s0 = inlined_call_operand.vmem [shape: f32[32,1], index: 0, kind: input, shape index: {}]
  %s1 = inlined_call_operand.vmem [shape: f32[32,7], index: 1, kind: input, shape index: {}]
  %s2 = inlined_call_operand.vmem [shape: f32[16,256], index: 2, kind: input, shape index: {}]
  %s3 = inlined_call_operand.vmem [shape: f32[32,256], index: 3, kind: input, shape index: {}]
  %s4 = inlined_call_operand.vmem [shape: f32[2,32], index: 4, kind: input, shape index: {}]
  %s5 = inlined_call_operand.vmem [shape: f32[7,8], index: 5, kind: input, shape index: {}]
  %s6 = inlined_call_operand.vmem [shape: f32[1,8], index: 6, kind: input, shape index: {}]
  %s7 = inlined_call_operand.vmem [shape: f32[1,8], index: 7, kind: input, shape index: {}]
  %s8 = inlined_call_operand.vmem [shape: bf16[24,8], index: 8, kind: input, shape index: {}]
  %s9 = inlined_call_operand.vmem [shape: f32[1,8], index: 9, kind: input, shape index: {}]
  %s10 = inlined_call_operand.vmem [shape: f32[1,8], index: 10, kind: input, shape index: {}]
  %s11 = inlined_call_operand.vmem [shape: bf16[24,16], index: 11, kind: input, shape index: {}]
  %s12 = inlined_call_operand.vmem [shape: f32[1,16], index: 12, kind: input, shape index: {}]
  %s13 = inlined_call_operand.vmem [shape: f32[1,16], index: 13, kind: input, shape index: {}]
  %s14 = inlined_call_operand.vmem [shape: bf16[8,16], index: 14, kind: input, shape index: {}]
  %s15 = inlined_call_operand.vmem [shape: f32[1,16], index: 15, kind: input, shape index: {}]
  %s16 = inlined_call_operand.vmem [shape: f32[1,16], index: 16, kind: input, shape index: {}]
  %s17 = inlined_call_operand.vmem [shape: bf16[48,16], index: 17, kind: input, shape index: {}]
  %s18 = inlined_call_operand.vmem [shape: f32[1,16], index: 18, kind: input, shape index: {}]
  %s19 = inlined_call_operand.vmem [shape: f32[1,16], index: 19, kind: input, shape index: {}]
  %s20 = inlined_call_operand.vmem [shape: bf16[256,5], index: 20, kind: input, shape index: {}]
  %s21 = inlined_call_operand.vmem [shape: f32[1,5], index: 21, kind: input, shape index: {}]
  %s22 = inlined_call_operand.hbm [shape: f32[2,5], index: 22, kind: output, shape index: {}]
  %s23 = sld [smem:[#allocation0]]
  $region98: #{_forward.1} parent=0
    _
  %s25 = ssub.s32 1, %s23
  %s26 = scalar_select 0, %s25, %s23
  $region1: #{_forward.1} parent=0
    #allocation2 [shape = 'u8[1024]{0}', space=vmem, size = 0x400, scoped, tag = 'output window, operand 0, single buffered']
    #allocation3 [shape = 's32[1]{0}', space=sflag, size = 0x4, scoped, tag = 'scoped memory for _forward.1']
    %27 = vsyncpa [#allocation3], 0
    // Predicated region
    $region2: #{_forward.1} parent=1 // pred_check
      _
    $region3: #{_forward.1} parent=1 // pred_check_branch
      %29 = sbr.rel (0) target = $region5
    $region4: #{_forward.1} parent=1 // pred_region
      _
    $region5: #{_forward.1} parent=1 // pred_fallthru
      _
    // Predicated region
    $region6: #{_forward.1} parent=1 // pred_check
      _
    $region7: #{_forward.1} parent=1 // pred_check_branch
      %31 = sbr.rel (0) target = $region9
    $region8: #{_forward.1} parent=1 // pred_region
      _
    $region9: #{_forward.1} parent=1 // pred_fallthru
      _
    // Predicated region
    $region10: #{_forward.1} parent=1 // pred_check
      _
    $region11: #{_forward.1} parent=1 // pred_check_branch
      %33 = sbr.rel (0) target = $region13
    $region12: #{_forward.1} parent=1 // pred_region
      _
    $region13: #{_forward.1} parent=1 // pred_fallthru
      _
    // Predicated region
    $region14: #{_forward.1} parent=1 // pred_check
      _
    $region15: #{_forward.1} parent=1 // pred_check_branch
      %35 = sbr.rel (0) target = $region17
    $region16: #{_forward.1} parent=1 // pred_region
      _
    $region17: #{_forward.1} parent=1 // pred_fallthru
      _
    // Predicated region
    $region18: #{_forward.1} parent=1 // pred_check
      _
    $region19: #{_forward.1} parent=1 // pred_check_branch
      %37 = sbr.rel (0) target = $region21
    $region20: #{_forward.1} parent=1 // pred_region
      _
    $region21: #{_forward.1} parent=1 // pred_fallthru
      _
    // Predicated region
    $region22: #{_forward.1} parent=1 // pred_check
      _
    $region23: #{_forward.1} parent=1 // pred_check_branch
      %39 = sbr.rel (0) target = $region25
    $region24: #{_forward.1} parent=1 // pred_region
      _
    $region25: #{_forward.1} parent=1 // pred_fallthru
      _
    // Predicated region
    $region26: #{_forward.1} parent=1 // pred_check
      _
    $region27: #{_forward.1} parent=1 // pred_check_branch
      %41 = sbr.rel (0) target = $region29
    $region28: #{_forward.1} parent=1 // pred_region
      _
    $region29: #{_forward.1} parent=1 // pred_fallthru
      _
    // Predicated region
    $region30: #{_forward.1} parent=1 // pred_check
      _
    $region31: #{_forward.1} parent=1 // pred_check_branch
      %43 = sbr.rel (0) target = $region33
    $region32: #{_forward.1} parent=1 // pred_region
      _
    $region33: #{_forward.1} parent=1 // pred_fallthru
      _
    // Predicated region
    $region34: #{_forward.1} parent=1 // pred_check
      _
    $region35: #{_forward.1} parent=1 // pred_check_branch
      %45 = sbr.rel (0) target = $region37
    $region36: #{_forward.1} parent=1 // pred_region
      _
    $region37: #{_forward.1} parent=1 // pred_fallthru
      _
    // Predicated region
    $region38: #{_forward.1} parent=1 // pred_check
      _
    $region39: #{_forward.1} parent=1 // pred_check_branch
      %47 = sbr.rel (0) target = $region41
    $region40: #{_forward.1} parent=1 // pred_region
      _
    $region41: #{_forward.1} parent=1 // pred_fallthru
      _
    // Predicated region
    $region42: #{_forward.1} parent=1 // pred_check
      _
    $region43: #{_forward.1} parent=1 // pred_check_branch
      %49 = sbr.rel (0) target = $region45
    $region44: #{_forward.1} parent=1 // pred_region
      _
    $region45: #{_forward.1} parent=1 // pred_fallthru
      _
    // Predicated region
    $region46: #{_forward.1} parent=1 // pred_check
      _
    $region47: #{_forward.1} parent=1 // pred_check_branch
      %51 = sbr.rel (0) target = $region49
    $region48: #{_forward.1} parent=1 // pred_region
      _
    $region49: #{_forward.1} parent=1 // pred_fallthru
      _
    // Predicated region
    $region50: #{_forward.1} parent=1 // pred_check
      _
    $region51: #{_forward.1} parent=1 // pred_check_branch
      %53 = sbr.rel (0) target = $region53
    $region52: #{_forward.1} parent=1 // pred_region
      _
    $region53: #{_forward.1} parent=1 // pred_fallthru
      _
    // Predicated region
    $region54: #{_forward.1} parent=1 // pred_check
      _
    $region55: #{_forward.1} parent=1 // pred_check_branch
      %55 = sbr.rel (0) target = $region57
    $region56: #{_forward.1} parent=1 // pred_region
      _
    $region57: #{_forward.1} parent=1 // pred_fallthru
      _
    // Predicated region
    $region58: #{_forward.1} parent=1 // pred_check
      _
    $region59: #{_forward.1} parent=1 // pred_check_branch
      %57 = sbr.rel (0) target = $region61
    $region60: #{_forward.1} parent=1 // pred_region
      _
    $region61: #{_forward.1} parent=1 // pred_fallthru
      _
    // Predicated region
    $region62: #{_forward.1} parent=1 // pred_check
      _
    $region63: #{_forward.1} parent=1 // pred_check_branch
      %59 = sbr.rel (0) target = $region65
    $region64: #{_forward.1} parent=1 // pred_region
      _
    $region65: #{_forward.1} parent=1 // pred_fallthru
      _
    // Predicated region
    $region66: #{_forward.1} parent=1 // pred_check
      _
    $region67: #{_forward.1} parent=1 // pred_check_branch
      %61 = sbr.rel (0) target = $region69
    $region68: #{_forward.1} parent=1 // pred_region
      _
    $region69: #{_forward.1} parent=1 // pred_fallthru
      _
    // Predicated region
    $region70: #{_forward.1} parent=1 // pred_check
      _
    $region71: #{_forward.1} parent=1 // pred_check_branch
      %63 = sbr.rel (0) target = $region73
    $region72: #{_forward.1} parent=1 // pred_region
      _
    $region73: #{_forward.1} parent=1 // pred_fallthru
      _
    // Predicated region
    $region74: #{_forward.1} parent=1 // pred_check
      _
    $region75: #{_forward.1} parent=1 // pred_check_branch
      %65 = sbr.rel (0) target = $region77
    $region76: #{_forward.1} parent=1 // pred_region
      _
    $region77: #{_forward.1} parent=1 // pred_fallthru
      _
    // Predicated region
    $region78: #{_forward.1} parent=1 // pred_check
      _
    $region79: #{_forward.1} parent=1 // pred_check_branch
      %67 = sbr.rel (0) target = $region81
    $region80: #{_forward.1} parent=1 // pred_region
      _
    $region81: #{_forward.1} parent=1 // pred_fallthru
      _
    // Predicated region
    $region82: #{_forward.1} parent=1 // pred_check
      _
    $region83: #{_forward.1} parent=1 // pred_check_branch
      %69 = sbr.rel (0) target = $region85
    $region84: #{_forward.1} parent=1 // pred_region
      _
    $region85: #{_forward.1} parent=1 // pred_fallthru
      _
    // Predicated region
    $region86: #{_forward.1} parent=1 // pred_check
      _
    $region87: #{_forward.1} parent=1 // pred_check_branch
      %71 = sbr.rel (0) target = $region89
    $region88: #{_forward.1} parent=1 // pred_region
      _
    $region89: #{_forward.1} parent=1 // pred_fallthru
      _
    %v73 = vld [vmem:[%s0] sm:$0xff]
    %v74 = vld [vmem:[%s0 + $0x8] sm:$0xff]
    %v75 = vld [vmem:[%s0 + $0x10] sm:$0xff]
    %v76 = vld [vmem:[%s0 + $0x18] sm:$0xff]
    %78 = vset.pattern.permute.xlu0 0
    %79 = vperm.xlu0 %78, %v73
    %v80 = vpop.permute.xlu0 %79
    %83 = vset.pattern.permute.xlu0 0
    %84 = vperm.xlu0 %83, %v74
    %v85 = vpop.permute.xlu0 %84
    %88 = vset.pattern.permute.xlu0 0
    %89 = vperm.xlu0 %88, %v75
    %v90 = vpop.permute.xlu0 %89
    %93 = vset.pattern.permute.xlu0 0
    %94 = vperm.xlu0 %93, %v76
    %v95 = vpop.permute.xlu0 %94
    %v97 = vrot.slane %v80, 5
    %v98 = vrot.slane %v85, 5
    %v99 = vrot.slane %v90, 5
    %v100 = vrot.slane %v95, 5
    %v101 = vlaneseq
    %v102 = vshrl.u32 %v101, 7
    %vm103 = vcmp.lt.s32.totalorder %v102, 3
    %v104 = vsel %vm103, %v99, %v100
    %v105 = vsel %vm103, %v98, %v99
    %v106 = vsel %vm103, %v97, %v98
    %v107 = vsel %vm103, %v100, %v97
    %v108 = vld [vmem:[%s1] sm:$0xff]
    %v109 = vld [vmem:[%s1 + $0x8] sm:$0xff]
    %v110 = vld [vmem:[%s1 + $0x10] sm:$0xff]
    %v111 = vld [vmem:[%s1 + $0x18] sm:$0xff]
    %113 = vset.pattern.permute.xlu0 0
    %114 = vperm.xlu0 %113, %v108
    %v115 = vpop.permute.xlu0 %114
    %118 = vset.pattern.permute.xlu0 0
    %119 = vperm.xlu0 %118, %v109
    %v120 = vpop.permute.xlu0 %119
    %123 = vset.pattern.permute.xlu0 0
    %124 = vperm.xlu0 %123, %v110
    %v125 = vpop.permute.xlu0 %124
    %128 = vset.pattern.permute.xlu0 0
    %129 = vperm.xlu0 %128, %v111
    %v130 = vpop.permute.xlu0 %129
    %v132 = vmul.f32 %v107, %v115
    %v133 = vmul.f32 %v106, %v120
    %v134 = vmul.f32 %v105, %v125
    %v135 = vmul.f32 %v104, %v130
    %v136 = vld [vmem:[%s5] sm:$0x1]
    %v137 = vlaneseq
    %v138 = vshrl.u32 %v137, 7
    %v139 = vsub.s32 0, %v138
    %v140 = vrot.slane %v136, %v139
    %v141 = vmul.f32 %v132, %v140
    %v142 = vmul.f32 %v133, %v140
    %v143 = vmul.f32 %v134, %v140
    %v144 = vmul.f32 %v135, %v140
    %v145 = vadd.f32 %v141, 0.0
    %v146 = vadd.f32 %v142, 0.0
    %v147 = vadd.f32 %v143, 0.0
    %v148 = vadd.f32 %v144, 0.0
    %v149 = vrot.slane %v80, 6
    %v150 = vrot.slane %v85, 6
    %v151 = vrot.slane %v90, 6
    %v152 = vrot.slane %v95, 6
    %vm153 = vcmp.lt.s32.totalorder %v102, 2
    %v154 = vsel %vm153, %v151, %v152
    %v155 = vsel %vm153, %v150, %v151
    %v156 = vsel %vm153, %v149, %v150
    %v157 = vsel %vm153, %v152, %v149
    %158 = vset.pattern.permute.xlu0 1
    %159 = vperm.xlu0 %158, %v108
    %v160 = vpop.permute.xlu0 %159
    %162 = vset.pattern.permute.xlu0 1
    %163 = vperm.xlu0 %162, %v109
    %v164 = vpop.permute.xlu0 %163
    %166 = vset.pattern.permute.xlu0 1
    %167 = vperm.xlu0 %166, %v110
    %v168 = vpop.permute.xlu0 %167
    %170 = vset.pattern.permute.xlu0 1
    %171 = vperm.xlu0 %170, %v111
    %v172 = vpop.permute.xlu0 %171
    %v174 = vmul.f32 %v157, %v160
    %v175 = vmul.f32 %v156, %v164
    %v176 = vmul.f32 %v155, %v168
    %v177 = vmul.f32 %v154, %v172
    %v178 = vld [vmem:[%s5 + $0x1] sm:$0x1]
    %v179 = vlaneseq
    %v180 = vshrl.u32 %v179, 7
    %v181 = vsub.s32 0, %v180
    %v182 = vrot.slane %v178, %v181
    %v183 = vmul.f32 %v174, %v182
    %v184 = vmul.f32 %v175, %v182
    %v185 = vmul.f32 %v176, %v182
    %v186 = vmul.f32 %v177, %v182
    %v187 = vadd.f32 %v145, %v183
    %v188 = vadd.f32 %v146, %v184
    %v189 = vadd.f32 %v147, %v185
    %v190 = vadd.f32 %v148, %v186
    %v191 = vrot.slane %v80, 7
    %v192 = vrot.slane %v85, 7
    %v193 = vrot.slane %v90, 7
    %v194 = vrot.slane %v95, 7
    %vm195 = vcmp.lt.s32.totalorder %v102, 1
    %v196 = vsel %vm195, %v193, %v194
    %v197 = vsel %vm195, %v192, %v193
    %v198 = vsel %vm195, %v191, %v192
    %v199 = vsel %vm195, %v194, %v191
    %200 = vset.pattern.permute.xlu0 2
    %201 = vperm.xlu0 %200, %v108
    %v202 = vpop.permute.xlu0 %201
    %204 = vset.pattern.permute.xlu0 2
    %205 = vperm.xlu0 %204, %v109
    %v206 = vpop.permute.xlu0 %205
    %208 = vset.pattern.permute.xlu0 2
    %209 = vperm.xlu0 %208, %v110
    %v210 = vpop.permute.xlu0 %209
    %212 = vset.pattern.permute.xlu0 2
    %213 = vperm.xlu0 %212, %v111
    %v214 = vpop.permute.xlu0 %213
    %v216 = vmul.f32 %v199, %v202
    %v217 = vmul.f32 %v198, %v206
    %v218 = vmul.f32 %v197, %v210
    %v219 = vmul.f32 %v196, %v214
    %v220 = vld [vmem:[%s5 + $0x2] sm:$0x1]
    %v221 = vlaneseq
    %v222 = vshrl.u32 %v221, 7
    %v223 = vsub.s32 0, %v222
    %v224 = vrot.slane %v220, %v223
    %v225 = vmul.f32 %v216, %v224
    %v226 = vmul.f32 %v217, %v224
    %v227 = vmul.f32 %v218, %v224
    %v228 = vmul.f32 %v219, %v224
    %v229 = vadd.f32 %v187, %v225
    %v230 = vadd.f32 %v188, %v226
    %v231 = vadd.f32 %v189, %v227
    %v232 = vadd.f32 %v190, %v228
    %v233 = vld [vmem:[%s5 + $0x3] sm:$0x1]
    %v234 = vlaneseq
    %v235 = vshrl.u32 %v234, 7
    %v236 = vsub.s32 0, %v235
    %v237 = vrot.slane %v233, %v236
    %v238 = vmul.f32 %v80, %v237
    %v239 = vmul.f32 %v85, %v237
    %v240 = vmul.f32 %v90, %v237
    %v241 = vmul.f32 %v95, %v237
    %v242 = vadd.f32 %v229, %v238
    %v243 = vadd.f32 %v230, %v239
    %v244 = vadd.f32 %v231, %v240
    %v245 = vadd.f32 %v232, %v241
    %v246 = vrot.slane %v80, 1
    %v247 = vrot.slane %v85, 1
    %v248 = vrot.slane %v90, 1
    %v249 = vrot.slane %v95, 1
    %vm250 = vcmp.lt.s32.totalorder %v102, 7
    %v251 = vsel %vm250, %v248, %v249
    %v252 = vsel %vm250, %v247, %v248
    %v253 = vsel %vm250, %v246, %v247
    %v254 = vsel %vm250, %v249, %v246
    %255 = vset.pattern.permute.xlu0 4
    %256 = vperm.xlu0 %255, %v108
    %v257 = vpop.permute.xlu0 %256
    %259 = vset.pattern.permute.xlu0 4
    %260 = vperm.xlu0 %259, %v109
    %v261 = vpop.permute.xlu0 %260
    %263 = vset.pattern.permute.xlu0 4
    %264 = vperm.xlu0 %263, %v110
    %v265 = vpop.permute.xlu0 %264
    %267 = vset.pattern.permute.xlu0 4
    %268 = vperm.xlu0 %267, %v111
    %v269 = vpop.permute.xlu0 %268
    %v271 = vmul.f32 %v253, %v257
    %v272 = vmul.f32 %v252, %v261
    %v273 = vmul.f32 %v251, %v265
    %v274 = vmul.f32 %v254, %v269
    %v275 = vld [vmem:[%s5 + $0x4] sm:$0x1]
    %v276 = vlaneseq
    %v277 = vshrl.u32 %v276, 7
    %v278 = vsub.s32 0, %v277
    %v279 = vrot.slane %v275, %v278
    %v280 = vmul.f32 %v271, %v279
    %v281 = vmul.f32 %v272, %v279
    %v282 = vmul.f32 %v273, %v279
    %v283 = vmul.f32 %v274, %v279
    %v284 = vadd.f32 %v242, %v280
    %v285 = vadd.f32 %v243, %v281
    %v286 = vadd.f32 %v244, %v282
    %v287 = vadd.f32 %v245, %v283
    %v288 = vrot.slane %v80, 2
    %v289 = vrot.slane %v85, 2
    %v290 = vrot.slane %v90, 2
    %v291 = vrot.slane %v95, 2
    %vm292 = vcmp.lt.s32.totalorder %v102, 6
    %v293 = vsel %vm292, %v290, %v291
    %v294 = vsel %vm292, %v289, %v290
    %v295 = vsel %vm292, %v288, %v289
    %v296 = vsel %vm292, %v291, %v288
    %297 = vset.pattern.permute.xlu0 5
    %298 = vperm.xlu0 %297, %v108
    %v299 = vpop.permute.xlu0 %298
    %301 = vset.pattern.permute.xlu0 5
    %302 = vperm.xlu0 %301, %v109
    %v303 = vpop.permute.xlu0 %302
    %305 = vset.pattern.permute.xlu0 5
    %306 = vperm.xlu0 %305, %v110
    %v307 = vpop.permute.xlu0 %306
    %309 = vset.pattern.permute.xlu0 5
    %310 = vperm.xlu0 %309, %v111
    %v311 = vpop.permute.xlu0 %310
    %v313 = vmul.f32 %v295, %v299
    %v314 = vmul.f32 %v294, %v303
    %v315 = vmul.f32 %v293, %v307
    %v316 = vmul.f32 %v296, %v311
    %v317 = vld [vmem:[%s5 + $0x5] sm:$0x1]
    %v318 = vlaneseq
    %v319 = vshrl.u32 %v318, 7
    %v320 = vsub.s32 0, %v319
    %v321 = vrot.slane %v317, %v320
    %v322 = vmul.f32 %v313, %v321
    %v323 = vmul.f32 %v314, %v321
    %v324 = vmul.f32 %v315, %v321
    %v325 = vmul.f32 %v316, %v321
    %v326 = vadd.f32 %v284, %v322
    %v327 = vadd.f32 %v285, %v323
    %v328 = vadd.f32 %v286, %v324
    %v329 = vadd.f32 %v287, %v325
    %v330 = vrot.slane %v80, 3
    %v331 = vrot.slane %v85, 3
    %v332 = vrot.slane %v90, 3
    %v333 = vrot.slane %v95, 3
    %vm334 = vcmp.lt.s32.totalorder %v102, 5
    %v335 = vsel %vm334, %v332, %v333
    %v336 = vsel %vm334, %v331, %v332
    %v337 = vsel %vm334, %v330, %v331
    %v338 = vsel %vm334, %v333, %v330
    %339 = vset.pattern.permute.xlu0 6
    %340 = vperm.xlu0 %339, %v108
    %v341 = vpop.permute.xlu0 %340
    %343 = vset.pattern.permute.xlu0 6
    %344 = vperm.xlu0 %343, %v109
    %v345 = vpop.permute.xlu0 %344
    %347 = vset.pattern.permute.xlu0 6
    %348 = vperm.xlu0 %347, %v110
    %v349 = vpop.permute.xlu0 %348
    %351 = vset.pattern.permute.xlu0 6
    %352 = vperm.xlu0 %351, %v111
    %v353 = vpop.permute.xlu0 %352
    %v355 = vmul.f32 %v337, %v341
    %v356 = vmul.f32 %v336, %v345
    %v357 = vmul.f32 %v335, %v349
    %v358 = vmul.f32 %v338, %v353
    %v359 = vld [vmem:[%s5 + $0x6] sm:$0x1]
    %v360 = vlaneseq
    %v361 = vshrl.u32 %v360, 7
    %v362 = vsub.s32 0, %v361
    %v363 = vrot.slane %v359, %v362
    %v364 = vmul.f32 %v355, %v363
    %v365 = vmul.f32 %v356, %v363
    %v366 = vmul.f32 %v357, %v363
    %v367 = vmul.f32 %v358, %v363
    %v368 = vadd.f32 %v326, %v364
    %v369 = vadd.f32 %v327, %v365
    %v370 = vadd.f32 %v328, %v366
    %v371 = vadd.f32 %v329, %v367
    %v372 = vld [vmem:[%s6] sm:$0x1]
    %v374 = vlaneseq
    %v375 = vshrl.u32 %v374, 7
    %v376 = vsub.s32 0, %v375
    %v377 = vrot.slane %v372, %v376
    %v379 = vmul.f32 %v368, %v377
    %v380 = vmul.f32 %v369, %v377
    %v381 = vmul.f32 %v370, %v377
    %v382 = vmul.f32 %v371, %v377
    %v383 = vld [vmem:[%s7] sm:$0x1]
    %v385 = vlaneseq
    %v386 = vshrl.u32 %v385, 7
    %v387 = vsub.s32 0, %v386
    %v388 = vrot.slane %v383, %v387
    %v390 = vadd.f32 %v379, %v388
    %v391 = vadd.f32 %v380, %v388
    %v392 = vadd.f32 %v381, %v388
    %v393 = vadd.f32 %v382, %v388
    %v394 = vmax.f32 %v390, 0.0
    %v395 = vmax.f32 %v391, 0.0
    %v396 = vmax.f32 %v392, 0.0
    %v397 = vmax.f32 %v393, 0.0
    %v398 = vrot.slane %v394, 7
    %v399 = vrot.slane %v395, 7
    %v400 = vrot.slane %v396, 7
    %v401 = vrot.slane %v397, 7
    %v402 = vsel %vm195, %v400, %v401
    %v403 = vsel %vm195, %v399, %v400
    %v404 = vsel %vm195, %v398, %v399
    %v405 = vsel %vm195, %v401, %v398
    %v406 = vmul.f32 %v405, %v202
    %v407 = vmul.f32 %v404, %v206
    %v408 = vmul.f32 %v403, %v210
    %v409 = vmul.f32 %v402, %v214
    %v410 = vld [vmem:[%s8] sm:$0xf]
    %v411 = vpack.c.bf16 %v407, %v406
    %v412 = vpack.c.bf16 %v409, %v408
    %v413 = vld [vmem:[%s8 + $0x4] sm:$0xf]
    %v414 = vpack.c.bf16 %v395, %v394
    %v415 = vpack.c.bf16 %v397, %v396
    %vm416 = vcmask 64512
    %v418 = vsel %vm416, %v414, 0
    %v421 = vsel %vm416, %v415, 0
    %vm423 = vcmask 1043456
    %v425 = vsel %vm423, %v413, 0
    %427 = vmatprep.subr.bf16.mxu0 0
    %428 = vmatpush1.bf16.msra.mxu0 %v425
    %429 = vmatprep.subr.bf16.mxu0 0
    %430 = vmatpush1.bf16.msra.mxu0 0
    %431 = vmatprep.subr.bf16.mxu0 0
    %432 = vmatpush1.bf16.msra.mxu0 0
    %433 = vmatprep.subr.bf16.mxu0 0
    %434 = vmatpush1.bf16.msra.mxu0 0
    %435 = vmatprep.subr.bf16.mxu0 0
    %436 = vmatpush1.bf16.msra.mxu0 0
    %437 = vmatprep.subr.bf16.mxu0 0
    %438 = vmatpush1.bf16.msra.mxu0 0
    %439 = vmatprep.subr.bf16.mxu0 0
    %440 = vmatpush1.bf16.msra.mxu0 0
    %441 = vmatprep.subr.bf16.mxu0 0
    %442 = vmatpush1.bf16.msra.mxu0 0
    %443 = vmatprep.subr.bf16.mxu0 0
    %444 = vmatpush1.bf16.msra.mxu0 0
    %445 = vmatprep.subr.bf16.mxu0 0
    %446 = vmatpush1.bf16.msra.mxu0 0
    %447 = vmatprep.subr.bf16.mxu0 0
    %448 = vmatpush1.bf16.msra.mxu0 0
    %449 = vmatprep.subr.bf16.mxu0 0
    %450 = vmatpush1.bf16.msra.mxu0 0
    %451 = vmatprep.subr.bf16.mxu0 0
    %452 = vmatpush1.bf16.msra.mxu0 0
    %453 = vmatprep.subr.bf16.mxu0 0
    %454 = vmatpush1.bf16.msra.mxu0 0
    %455 = vmatprep.subr.bf16.mxu0 0
    %456 = vmatpush1.bf16.msra.mxu0 0
    %457 = vmatprep.subr.bf16.mxu0 0
    %458 = vmatpush1.bf16.msra.mxu0 0
    %459 = vmatprep.mubr.bf16.mxu0 0
    %460 = vmatmul.mubr.bf16.gmra.mrb[0].mxu0 %v418
    %v461 = vpop.f32.mrb[0].mxu0
    %v462 = vadd.f32 0.0, %v461
    %v463 = vpop.f32.mrb[0].mxu0
    %v464 = vpop.f32.mrb[0].mxu0
    %v465 = vadd.f32 0.0, %v464
    %v466 = vpop.f32.mrb[0].mxu0
    %467 = vmatprep.mubr.bf16.mxu0 0
    %468 = vmatmul.mubr.bf16.gmra.mrb[0].mxu0 %v421
    %v469 = vpop.f32.mrb[0].mxu0
    %v470 = vadd.f32 0.0, %v469
    %v471 = vpop.f32.mrb[0].mxu0
    %v472 = vpop.f32.mrb[0].mxu0
    %v473 = vadd.f32 0.0, %v472
    %v474 = vpop.f32.mrb[0].mxu0
    %475 = vdwg.mxu0
    %v477 = vsel %vm416, %v411, 0
    %v480 = vsel %vm416, %v412, 0
    %v483 = vsel %vm423, %v410, 0
    %485 = vmatprep.subr.bf16.mxu0 0
    %486 = vmatpush1.bf16.msra.mxu0 %v483
    %487 = vmatprep.subr.bf16.mxu0 0
    %488 = vmatpush1.bf16.msra.mxu0 0
    %489 = vmatprep.subr.bf16.mxu0 0
    %490 = vmatpush1.bf16.msra.mxu0 0
    %491 = vmatprep.subr.bf16.mxu0 0
    %492 = vmatpush1.bf16.msra.mxu0 0
    %493 = vmatprep.subr.bf16.mxu0 0
    %494 = vmatpush1.bf16.msra.mxu0 0
    %495 = vmatprep.subr.bf16.mxu0 0
    %496 = vmatpush1.bf16.msra.mxu0 0
    %497 = vmatprep.subr.bf16.mxu0 0
    %498 = vmatpush1.bf16.msra.mxu0 0
    %499 = vmatprep.subr.bf16.mxu0 0
    %500 = vmatpush1.bf16.msra.mxu0 0
    %501 = vmatprep.subr.bf16.mxu0 0
    %502 = vmatpush1.bf16.msra.mxu0 0
    %503 = vmatprep.subr.bf16.mxu0 0
    %504 = vmatpush1.bf16.msra.mxu0 0
    %505 = vmatprep.subr.bf16.mxu0 0
    %506 = vmatpush1.bf16.msra.mxu0 0
    %507 = vmatprep.subr.bf16.mxu0 0
    %508 = vmatpush1.bf16.msra.mxu0 0
    %509 = vmatprep.subr.bf16.mxu0 0
    %510 = vmatpush1.bf16.msra.mxu0 0
    %511 = vmatprep.subr.bf16.mxu0 0
    %512 = vmatpush1.bf16.msra.mxu0 0
    %513 = vmatprep.subr.bf16.mxu0 0
    %514 = vmatpush1.bf16.msra.mxu0 0
    %515 = vmatprep.subr.bf16.mxu0 0
    %516 = vmatpush1.bf16.msra.mxu0 0
    %517 = vmatprep.mubr.bf16.mxu0 0
    %518 = vmatmul.mubr.bf16.gmra.mrb[0].mxu0 %v477
    %v519 = vpop.f32.mrb[0].mxu0
    %v520 = vadd.f32 %v462, %v519
    %v521 = vpop.f32.mrb[0].mxu0
    %v522 = vpop.f32.mrb[0].mxu0
    %v523 = vadd.f32 %v465, %v522
    %v524 = vpop.f32.mrb[0].mxu0
    %525 = vmatprep.mubr.bf16.mxu0 0
    %526 = vmatmul.mubr.bf16.gmra.mrb[0].mxu0 %v480
    %v527 = vpop.f32.mrb[0].mxu0
    %v528 = vadd.f32 %v470, %v527
    %v529 = vpop.f32.mrb[0].mxu0
    %v530 = vpop.f32.mrb[0].mxu0
    %v531 = vadd.f32 %v473, %v530
    %v532 = vpop.f32.mrb[0].mxu0
    %533 = vdwg.mxu0
    %v534 = vrot.slane %v394, 1
    %v535 = vrot.slane %v395, 1
    %v536 = vrot.slane %v396, 1
    %v537 = vrot.slane %v397, 1
    %v538 = vsel %vm250, %v536, %v537
    %v539 = vsel %vm250, %v535, %v536
    %v540 = vsel %vm250, %v534, %v535
    %v541 = vsel %vm250, %v537, %v534
    %v542 = vmul.f32 %v540, %v257
    %v543 = vmul.f32 %v539, %v261
    %v544 = vmul.f32 %v538, %v265
    %v545 = vmul.f32 %v541, %v269
    %v546 = vld [vmem:[%s8 + $0x8] sm:$0xf]
    %v547 = vpack.c.bf16 %v543, %v542
    %v548 = vpack.c.bf16 %v545, %v544
    %v550 = vsel %vm416, %v547, 0
    %v553 = vsel %vm416, %v548, 0
    %v556 = vsel %vm423, %v546, 0
    %558 = vmatprep.subr.bf16.mxu0 0
    %559 = vmatpush1.bf16.msra.mxu0 %v556
    %560 = vmatprep.subr.bf16.mxu0 0
    %561 = vmatpush1.bf16.msra.mxu0 0
    %562 = vmatprep.subr.bf16.mxu0 0
    %563 = vmatpush1.bf16.msra.mxu0 0
    %564 = vmatprep.subr.bf16.mxu0 0
    %565 = vmatpush1.bf16.msra.mxu0 0
    %566 = vmatprep.subr.bf16.mxu0 0
    %567 = vmatpush1.bf16.msra.mxu0 0
    %568 = vmatprep.subr.bf16.mxu0 0
    %569 = vmatpush1.bf16.msra.mxu0 0
    %570 = vmatprep.subr.bf16.mxu0 0
    %571 = vmatpush1.bf16.msra.mxu0 0
    %572 = vmatprep.subr.bf16.mxu0 0
    %573 = vmatpush1.bf16.msra.mxu0 0
    %574 = vmatprep.subr.bf16.mxu0 0
    %575 = vmatpush1.bf16.msra.mxu0 0
    %576 = vmatprep.subr.bf16.mxu0 0
    %577 = vmatpush1.bf16.msra.mxu0 0
    %578 = vmatprep.subr.bf16.mxu0 0
    %579 = vmatpush1.bf16.msra.mxu0 0
    %580 = vmatprep.subr.bf16.mxu0 0
    %581 = vmatpush1.bf16.msra.mxu0 0
    %582 = vmatprep.subr.bf16.mxu0 0
    %583 = vmatpush1.bf16.msra.mxu0 0
    %584 = vmatprep.subr.bf16.mxu0 0
    %585 = vmatpush1.bf16.msra.mxu0 0
    %586 = vmatprep.subr.bf16.mxu0 0
    %587 = vmatpush1.bf16.msra.mxu0 0
    %588 = vmatprep.subr.bf16.mxu0 0
    %589 = vmatpush1.bf16.msra.mxu0 0
    %590 = vmatprep.mubr.bf16.mxu0 0
    %591 = vmatmul.mubr.bf16.gmra.mrb[0].mxu0 %v550
    %v592 = vpop.f32.mrb[0].mxu0
    %v593 = vadd.f32 0.0, %v592
    %v594 = vpop.f32.mrb[0].mxu0
    %v595 = vpop.f32.mrb[0].mxu0
    %v596 = vadd.f32 0.0, %v595
    %v597 = vpop.f32.mrb[0].mxu0
    %598 = vmatprep.mubr.bf16.mxu0 0
    %599 = vmatmul.mubr.bf16.gmra.mrb[0].mxu0 %v553
    %v600 = vpop.f32.mrb[0].mxu0
    %v601 = vadd.f32 0.0, %v600
    %v602 = vpop.f32.mrb[0].mxu0
    %v603 = vpop.f32.mrb[0].mxu0
    %v604 = vadd.f32 0.0, %v603
    %v605 = vpop.f32.mrb[0].mxu0
    %606 = vdwg.mxu0
    %v607 = vadd.f32 %v520, %v593
    %v608 = vadd.f32 %v523, %v596
    %v609 = vadd.f32 %v528, %v601
    %v610 = vadd.f32 %v531, %v604
    %v611 = vld [vmem:[%s9] sm:$0x1]
    %v613 = vlaneseq
    %v614 = vshrl.u32 %v613, 7
    %v615 = vsub.s32 0, %v614
    %v616 = vrot.slane %v611, %v615
    %v618 = vmul.f32 %v607, %v616
    %v619 = vmul.f32 %v608, %v616
    %v620 = vmul.f32 %v609, %v616
    %v621 = vmul.f32 %v610, %v616
    %v622 = vld [vmem:[%s10] sm:$0x1]
    %v624 = vlaneseq
    %v625 = vshrl.u32 %v624, 7
    %v626 = vsub.s32 0, %v625
    %v627 = vrot.slane %v622, %v626
    %v629 = vadd.f32 %v618, %v627
    %v630 = vadd.f32 %v619, %v627
    %v631 = vadd.f32 %v620, %v627
    %v632 = vadd.f32 %v621, %v627
    %v633 = vadd.f32 %v629, %v394
    %v634 = vadd.f32 %v630, %v395
    %v635 = vadd.f32 %v631, %v396
    %v636 = vadd.f32 %v632, %v397
    %v637 = vmax.f32 %v633, 0.0
    %v638 = vmax.f32 %v634, 0.0
    %v639 = vmax.f32 %v635, 0.0
    %v640 = vmax.f32 %v636, 0.0
    %v641 = vpack.c.bf16 %v638, %v637
    %v642 = vpack.c.bf16 %v640, %v639
    %v643 = vld [vmem:[%s14] sm:$0xf]
    %v645 = vsel %vm416, %v641, 0
    %v648 = vsel %vm416, %v642, 0
    %v651 = vsel %vm423, %v643, 0
    %653 = vmatprep.subr.bf16.mxu0 0
    %654 = vmatpush1.bf16.msra.mxu0 %v651
    %655 = vmatprep.subr.bf16.mxu0 0
    %656 = vmatpush1.bf16.msra.mxu0 0
    %657 = vmatprep.subr.bf16.mxu0 0
    %658 = vmatpush1.bf16.msra.mxu0 0
    %659 = vmatprep.subr.bf16.mxu0 0
    %660 = vmatpush1.bf16.msra.mxu0 0
    %661 = vmatprep.subr.bf16.mxu0 0
    %662 = vmatpush1.bf16.msra.mxu0 0
    %663 = vmatprep.subr.bf16.mxu0 0
    %664 = vmatpush1.bf16.msra.mxu0 0
    %665 = vmatprep.subr.bf16.mxu0 0
    %666 = vmatpush1.bf16.msra.mxu0 0
    %667 = vmatprep.subr.bf16.mxu0 0
    %668 = vmatpush1.bf16.msra.mxu0 0
    %669 = vmatprep.subr.bf16.mxu0 0
    %670 = vmatpush1.bf16.msra.mxu0 0
    %671 = vmatprep.subr.bf16.mxu0 0
    %672 = vmatpush1.bf16.msra.mxu0 0
    %673 = vmatprep.subr.bf16.mxu0 0
    %674 = vmatpush1.bf16.msra.mxu0 0
    %675 = vmatprep.subr.bf16.mxu0 0
    %676 = vmatpush1.bf16.msra.mxu0 0
    %677 = vmatprep.subr.bf16.mxu0 0
    %678 = vmatpush1.bf16.msra.mxu0 0
    %679 = vmatprep.subr.bf16.mxu0 0
    %680 = vmatpush1.bf16.msra.mxu0 0
    %681 = vmatprep.subr.bf16.mxu0 0
    %682 = vmatpush1.bf16.msra.mxu0 0
    %683 = vmatprep.subr.bf16.mxu0 0
    %684 = vmatpush1.bf16.msra.mxu0 0
    %685 = vmatprep.mubr.bf16.mxu0 0
    %686 = vmatmul.mubr.bf16.gmra.mrb[0].mxu0 %v645
    %v687 = vpop.f32.mrb[0].mxu0
    %v688 = vadd.f32 0.0, %v687
    %v689 = vpop.f32.mrb[0].mxu0
    %v690 = vpop.f32.mrb[0].mxu0
    %v691 = vadd.f32 0.0, %v690
    %v692 = vpop.f32.mrb[0].mxu0
    %693 = vmatprep.mubr.bf16.mxu0 0
    %694 = vmatmul.mubr.bf16.gmra.mrb[0].mxu0 %v648
    %v695 = vpop.f32.mrb[0].mxu0
    %v696 = vadd.f32 0.0, %v695
    %v697 = vpop.f32.mrb[0].mxu0
    %v698 = vpop.f32.mrb[0].mxu0
    %v699 = vadd.f32 0.0, %v698
    %v700 = vpop.f32.mrb[0].mxu0
    %701 = vdwg.mxu0
    %v702 = vld [vmem:[%s15] sm:$0x1]
    %v704 = vlaneseq
    %v705 = vshrl.u32 %v704, 7
    %v706 = vsub.s32 0, %v705
    %v707 = vrot.slane %v702, %v706
    %v709 = vmul.f32 %v688, %v707
    %v710 = vmul.f32 %v691, %v707
    %v711 = vmul.f32 %v696, %v707
    %v712 = vmul.f32 %v699, %v707
    %v713 = vld [vmem:[%s16] sm:$0x1]
    %v715 = vlaneseq
    %v716 = vshrl.u32 %v715, 7
    %v717 = vsub.s32 0, %v716
    %v718 = vrot.slane %v713, %v717
    %v720 = vadd.f32 %v709, %v718
    %v721 = vadd.f32 %v710, %v718
    %v722 = vadd.f32 %v711, %v718
    %v723 = vadd.f32 %v712, %v718
    %v724 = vrot.slane %v637, 7
    %v725 = vrot.slane %v638, 7
    %v726 = vrot.slane %v639, 7
    %v727 = vrot.slane %v640, 7
    %v728 = vsel %vm195, %v726, %v727
    %v729 = vsel %vm195, %v725, %v726
    %v730 = vsel %vm195, %v724, %v725
    %v731 = vsel %vm195, %v727, %v724
    %v732 = vmul.f32 %v731, %v202
    %v733 = vmul.f32 %v730, %v206
    %v734 = vmul.f32 %v729, %v210
    %v735 = vmul.f32 %v728, %v214
    %v736 = vld [vmem:[%s11] sm:$0xf]
    %v737 = vpack.c.bf16 %v733, %v732
    %v738 = vpack.c.bf16 %v735, %v734
    %v739 = vld [vmem:[%s11 + $0x4] sm:$0xf]
    %v741 = vsel %vm423, %v739, 0
    %743 = vmatprep.subr.bf16.mxu0 0
    %744 = vmatpush1.bf16.msra.mxu0 %v741
    %745 = vmatprep.subr.bf16.mxu0 0
    %746 = vmatpush1.bf16.msra.mxu0 0
    %747 = vmatprep.subr.bf16.mxu0 0
    %748 = vmatpush1.bf16.msra.mxu0 0
    %749 = vmatprep.subr.bf16.mxu0 0
    %750 = vmatpush1.bf16.msra.mxu0 0
    %751 = vmatprep.subr.bf16.mxu0 0
    %752 = vmatpush1.bf16.msra.mxu0 0
    %753 = vmatprep.subr.bf16.mxu0 0
    %754 = vmatpush1.bf16.msra.mxu0 0
    %755 = vmatprep.subr.bf16.mxu0 0
    %756 = vmatpush1.bf16.msra.mxu0 0
    %757 = vmatprep.subr.bf16.mxu0 0
    %758 = vmatpush1.bf16.msra.mxu0 0
    %759 = vmatprep.subr.bf16.mxu0 0
    %760 = vmatpush1.bf16.msra.mxu0 0
    %761 = vmatprep.subr.bf16.mxu0 0
    %762 = vmatpush1.bf16.msra.mxu0 0
    %763 = vmatprep.subr.bf16.mxu0 0
    %764 = vmatpush1.bf16.msra.mxu0 0
    %765 = vmatprep.subr.bf16.mxu0 0
    %766 = vmatpush1.bf16.msra.mxu0 0
    %767 = vmatprep.subr.bf16.mxu0 0
    %768 = vmatpush1.bf16.msra.mxu0 0
    %769 = vmatprep.subr.bf16.mxu0 0
    %770 = vmatpush1.bf16.msra.mxu0 0
    %771 = vmatprep.subr.bf16.mxu0 0
    %772 = vmatpush1.bf16.msra.mxu0 0
    %773 = vmatprep.subr.bf16.mxu0 0
    %774 = vmatpush1.bf16.msra.mxu0 0
    %775 = vmatprep.mubr.bf16.mxu0 0
    %776 = vmatmul.mubr.bf16.gmra.mrb[0].mxu0 %v645
    %v777 = vpop.f32.mrb[0].mxu0
    %v778 = vadd.f32 0.0, %v777
    %v779 = vpop.f32.mrb[0].mxu0
    %v780 = vpop.f32.mrb[0].mxu0
    %v781 = vadd.f32 0.0, %v780
    %v782 = vpop.f32.mrb[0].mxu0
    %783 = vmatprep.mubr.bf16.mxu0 0
    %784 = vmatmul.mubr.bf16.gmra.mrb[0].mxu0 %v648
    %v785 = vpop.f32.mrb[0].mxu0
    %v786 = vadd.f32 0.0, %v785
    %v787 = vpop.f32.mrb[0].mxu0
    %v788 = vpop.f32.mrb[0].mxu0
    %v789 = vadd.f32 0.0, %v788
    %v790 = vpop.f32.mrb[0].mxu0
    %791 = vdwg.mxu0
    %v793 = vsel %vm416, %v737, 0
    %v796 = vsel %vm416, %v738, 0
    %v799 = vsel %vm423, %v736, 0
    %801 = vmatprep.subr.bf16.mxu0 0
    %802 = vmatpush1.bf16.msra.mxu0 %v799
    %803 = vmatprep.subr.bf16.mxu0 0
    %804 = vmatpush1.bf16.msra.mxu0 0
    %805 = vmatprep.subr.bf16.mxu0 0
    %806 = vmatpush1.bf16.msra.mxu0 0
    %807 = vmatprep.subr.bf16.mxu0 0
    %808 = vmatpush1.bf16.msra.mxu0 0
    %809 = vmatprep.subr.bf16.mxu0 0
    %810 = vmatpush1.bf16.msra.mxu0 0
    %811 = vmatprep.subr.bf16.mxu0 0
    %812 = vmatpush1.bf16.msra.mxu0 0
    %813 = vmatprep.subr.bf16.mxu0 0
    %814 = vmatpush1.bf16.msra.mxu0 0
    %815 = vmatprep.subr.bf16.mxu0 0
    %816 = vmatpush1.bf16.msra.mxu0 0
    %817 = vmatprep.subr.bf16.mxu0 0
    %818 = vmatpush1.bf16.msra.mxu0 0
    %819 = vmatprep.subr.bf16.mxu0 0
    %820 = vmatpush1.bf16.msra.mxu0 0
    %821 = vmatprep.subr.bf16.mxu0 0
    %822 = vmatpush1.bf16.msra.mxu0 0
    %823 = vmatprep.subr.bf16.mxu0 0
    %824 = vmatpush1.bf16.msra.mxu0 0
    %825 = vmatprep.subr.bf16.mxu0 0
    %826 = vmatpush1.bf16.msra.mxu0 0
    %827 = vmatprep.subr.bf16.mxu0 0
    %828 = vmatpush1.bf16.msra.mxu0 0
    %829 = vmatprep.subr.bf16.mxu0 0
    %830 = vmatpush1.bf16.msra.mxu0 0
    %831 = vmatprep.subr.bf16.mxu0 0
    %832 = vmatpush1.bf16.msra.mxu0 0
    %833 = vmatprep.mubr.bf16.mxu0 0
    %834 = vmatmul.mubr.bf16.gmra.mrb[0].mxu0 %v793
    %v835 = vpop.f32.mrb[0].mxu0
    %v836 = vadd.f32 %v778, %v835
    %v837 = vpop.f32.mrb[0].mxu0
    %v838 = vpop.f32.mrb[0].mxu0
    %v839 = vadd.f32 %v781, %v838
    %v840 = vpop.f32.mrb[0].mxu0
    %841 = vmatprep.mubr.bf16.mxu0 0
    %842 = vmatmul.mubr.bf16.gmra.mrb[0].mxu0 %v796
    %v843 = vpop.f32.mrb[0].mxu0
    %v844 = vadd.f32 %v786, %v843
    %v845 = vpop.f32.mrb[0].mxu0
    %v846 = vpop.f32.mrb[0].mxu0
    %v847 = vadd.f32 %v789, %v846
    %v848 = vpop.f32.mrb[0].mxu0
    %849 = vdwg.mxu0
    %v850 = vrot.slane %v637, 1
    %v851 = vrot.slane %v638, 1
    %v852 = vrot.slane %v639, 1
    %v853 = vrot.slane %v640, 1
    %v854 = vsel %vm250, %v852, %v853
    %v855 = vsel %vm250, %v851, %v852
    %v856 = vsel %vm250, %v850, %v851
    %v857 = vsel %vm250, %v853, %v850
    %v858 = vmul.f32 %v856, %v257
    %v859 = vmul.f32 %v855, %v261
    %v860 = vmul.f32 %v854, %v265
    %v861 = vmul.f32 %v857, %v269
    %v862 = vld [vmem:[%s11 + $0x8] sm:$0xf]
    %v863 = vpack.c.bf16 %v859, %v858
    %v864 = vpack.c.bf16 %v861, %v860
    %v866 = vsel %vm416, %v863, 0
    %v869 = vsel %vm416, %v864, 0
    %v872 = vsel %vm423, %v862, 0
    %874 = vmatprep.subr.bf16.mxu0 0
    %875 = vmatpush1.bf16.msra.mxu0 %v872
    %876 = vmatprep.subr.bf16.mxu0 0
    %877 = vmatpush1.bf16.msra.mxu0 0
    %878 = vmatprep.subr.bf16.mxu0 0
    %879 = vmatpush1.bf16.msra.mxu0 0
    %880 = vmatprep.subr.bf16.mxu0 0
    %881 = vmatpush1.bf16.msra.mxu0 0
    %882 = vmatprep.subr.bf16.mxu0 0
    %883 = vmatpush1.bf16.msra.mxu0 0
    %884 = vmatprep.subr.bf16.mxu0 0
    %885 = vmatpush1.bf16.msra.mxu0 0
    %886 = vmatprep.subr.bf16.mxu0 0
    %887 = vmatpush1.bf16.msra.mxu0 0
    %888 = vmatprep.subr.bf16.mxu0 0
    %889 = vmatpush1.bf16.msra.mxu0 0
    %890 = vmatprep.subr.bf16.mxu0 0
    %891 = vmatpush1.bf16.msra.mxu0 0
    %892 = vmatprep.subr.bf16.mxu0 0
    %893 = vmatpush1.bf16.msra.mxu0 0
    %894 = vmatprep.subr.bf16.mxu0 0
    %895 = vmatpush1.bf16.msra.mxu0 0
    %896 = vmatprep.subr.bf16.mxu0 0
    %897 = vmatpush1.bf16.msra.mxu0 0
    %898 = vmatprep.subr.bf16.mxu0 0
    %899 = vmatpush1.bf16.msra.mxu0 0
    %900 = vmatprep.subr.bf16.mxu0 0
    %901 = vmatpush1.bf16.msra.mxu0 0
    %902 = vmatprep.subr.bf16.mxu0 0
    %903 = vmatpush1.bf16.msra.mxu0 0
    %904 = vmatprep.subr.bf16.mxu0 0
    %905 = vmatpush1.bf16.msra.mxu0 0
    %906 = vmatprep.mubr.bf16.mxu0 0
    %907 = vmatmul.mubr.bf16.gmra.mrb[0].mxu0 %v866
    %v908 = vpop.f32.mrb[0].mxu0
    %v909 = vadd.f32 0.0, %v908
    %v910 = vpop.f32.mrb[0].mxu0
    %v911 = vpop.f32.mrb[0].mxu0
    %v912 = vadd.f32 0.0, %v911
    %v913 = vpop.f32.mrb[0].mxu0
    %914 = vmatprep.mubr.bf16.mxu0 0
    %915 = vmatmul.mubr.bf16.gmra.mrb[0].mxu0 %v869
    %v916 = vpop.f32.mrb[0].mxu0
    %v917 = vadd.f32 0.0, %v916
    %v918 = vpop.f32.mrb[0].mxu0
    %v919 = vpop.f32.mrb[0].mxu0
    %v920 = vadd.f32 0.0, %v919
    %v921 = vpop.f32.mrb[0].mxu0
    %922 = vdwg.mxu0
    %v923 = vadd.f32 %v836, %v909
    %v924 = vadd.f32 %v839, %v912
    %v925 = vadd.f32 %v844, %v917
    %v926 = vadd.f32 %v847, %v920
    %v927 = vld [vmem:[%s12] sm:$0x1]
    %v929 = vlaneseq
    %v930 = vshrl.u32 %v929, 7
    %v931 = vsub.s32 0, %v930
    %v932 = vrot.slane %v927, %v931
    %v934 = vmul.f32 %v923, %v932
    %v935 = vmul.f32 %v924, %v932
    %v936 = vmul.f32 %v925, %v932
    %v937 = vmul.f32 %v926, %v932
    %v938 = vld [vmem:[%s13] sm:$0x1]
    %v940 = vlaneseq
    %v941 = vshrl.u32 %v940, 7
    %v942 = vsub.s32 0, %v941
    %v943 = vrot.slane %v938, %v942
    %v945 = vadd.f32 %v934, %v943
    %v946 = vadd.f32 %v935, %v943
    %v947 = vadd.f32 %v936, %v943
    %v948 = vadd.f32 %v937, %v943
    %v949 = vadd.f32 %v945, %v720
    %v950 = vadd.f32 %v946, %v721
    %v951 = vadd.f32 %v947, %v722
    %v952 = vadd.f32 %v948, %v723
    %v953 = vmax.f32 %v949, 0.0
    %v954 = vmax.f32 %v950, 0.0
    %v955 = vmax.f32 %v951, 0.0
    %v956 = vmax.f32 %v952, 0.0
    %v957 = vrot.slane %v953, 7
    %v958 = vrot.slane %v954, 7
    %v959 = vrot.slane %v955, 7
    %v960 = vrot.slane %v956, 7
    %v961 = vsel %vm195, %v959, %v960
    %v962 = vsel %vm195, %v958, %v959
    %v963 = vsel %vm195, %v957, %v958
    %v964 = vsel %vm195, %v960, %v957
    %v965 = vmul.f32 %v964, %v202
    %v966 = vmul.f32 %v963, %v206
    %v967 = vmul.f32 %v962, %v210
    %v968 = vmul.f32 %v961, %v214
    %v969 = vld [vmem:[%s17] sm:$0xf]
    %v970 = vld [vmem:[%s17 + $0x4] sm:$0xf]
    %v971 = vpack.c.bf16 %v966, %v965
    %v972 = vpack.c.bf16 %v968, %v967
    %v973 = vld [vmem:[%s17 + $0x8] sm:$0xf]
    %v974 = vld [vmem:[%s17 + $0xc] sm:$0xf]
    %v975 = vpack.c.bf16 %v954, %v953
    %v976 = vpack.c.bf16 %v956, %v955
    %v979 = vunpack.c.l.b16 %v973
    %v980 = vunpack.c.l.b16 %v974
    %v981 = vpack.c.b16 %v980, %v979
    %vm983 = vcmask 130048
    %v985 = vsel %vm983, %v975, 0
    %v988 = vsel %vm983, %v976, 0
    %990 = vmatprep.subr.bf16.mxu0 0
    %991 = vmatpush1.bf16.msra.mxu0 %v981
    %992 = vmatprep.subr.bf16.mxu0 0
    %993 = vmatpush1.bf16.msra.mxu0 0
    %994 = vmatprep.subr.bf16.mxu0 0
    %995 = vmatpush1.bf16.msra.mxu0 0
    %996 = vmatprep.subr.bf16.mxu0 0
    %997 = vmatpush1.bf16.msra.mxu0 0
    %998 = vmatprep.subr.bf16.mxu0 0
    %999 = vmatpush1.bf16.msra.mxu0 0
    %1000 = vmatprep.subr.bf16.mxu0 0
    %1001 = vmatpush1.bf16.msra.mxu0 0
    %1002 = vmatprep.subr.bf16.mxu0 0
    %1003 = vmatpush1.bf16.msra.mxu0 0
    %1004 = vmatprep.subr.bf16.mxu0 0
    %1005 = vmatpush1.bf16.msra.mxu0 0
    %1006 = vmatprep.subr.bf16.mxu0 0
    %1007 = vmatpush1.bf16.msra.mxu0 0
    %1008 = vmatprep.subr.bf16.mxu0 0
    %1009 = vmatpush1.bf16.msra.mxu0 0
    %1010 = vmatprep.subr.bf16.mxu0 0
    %1011 = vmatpush1.bf16.msra.mxu0 0
    %1012 = vmatprep.subr.bf16.mxu0 0
    %1013 = vmatpush1.bf16.msra.mxu0 0
    %1014 = vmatprep.subr.bf16.mxu0 0
    %1015 = vmatpush1.bf16.msra.mxu0 0
    %1016 = vmatprep.subr.bf16.mxu0 0
    %1017 = vmatpush1.bf16.msra.mxu0 0
    %1018 = vmatprep.subr.bf16.mxu0 0
    %1019 = vmatpush1.bf16.msra.mxu0 0
    %1020 = vmatprep.subr.bf16.mxu0 0
    %1021 = vmatpush1.bf16.msra.mxu0 0
    %1022 = vmatprep.mubr.bf16.mxu0 0
    %1023 = vmatmul.mubr.bf16.gmra.mrb[0].mxu0 %v985
    %v1024 = vpop.f32.mrb[0].mxu0
    %v1025 = vadd.f32 0.0, %v1024
    %v1026 = vpop.f32.mrb[0].mxu0
    %v1027 = vpop.f32.mrb[0].mxu0
    %v1028 = vadd.f32 0.0, %v1027
    %v1029 = vpop.f32.mrb[0].mxu0
    %1030 = vmatprep.mubr.bf16.mxu0 0
    %1031 = vmatmul.mubr.bf16.gmra.mrb[0].mxu0 %v988
    %v1032 = vpop.f32.mrb[0].mxu0
    %v1033 = vadd.f32 0.0, %v1032
    %v1034 = vpop.f32.mrb[0].mxu0
    %v1035 = vpop.f32.mrb[0].mxu0
    %v1036 = vadd.f32 0.0, %v1035
    %v1037 = vpop.f32.mrb[0].mxu0
    %1038 = vdwg.mxu0
    %v1041 = vunpack.c.l.b16 %v969
    %v1042 = vunpack.c.l.b16 %v970
    %v1043 = vpack.c.b16 %v1042, %v1041
    %v1046 = vsel %vm983, %v971, 0
    %v1049 = vsel %vm983, %v972, 0
    %1051 = vmatprep.subr.bf16.mxu0 0
    %1052 = vmatpush1.bf16.msra.mxu0 %v1043
    %1053 = vmatprep.subr.bf16.mxu0 0
    %1054 = vmatpush1.bf16.msra.mxu0 0
    %1055 = vmatprep.subr.bf16.mxu0 0
    %1056 = vmatpush1.bf16.msra.mxu0 0
    %1057 = vmatprep.subr.bf16.mxu0 0
    %1058 = vmatpush1.bf16.msra.mxu0 0
    %1059 = vmatprep.subr.bf16.mxu0 0
    %1060 = vmatpush1.bf16.msra.mxu0 0
    %1061 = vmatprep.subr.bf16.mxu0 0
    %1062 = vmatpush1.bf16.msra.mxu0 0
    %1063 = vmatprep.subr.bf16.mxu0 0
    %1064 = vmatpush1.bf16.msra.mxu0 0
    %1065 = vmatprep.subr.bf16.mxu0 0
    %1066 = vmatpush1.bf16.msra.mxu0 0
    %1067 = vmatprep.subr.bf16.mxu0 0
    %1068 = vmatpush1.bf16.msra.mxu0 0
    %1069 = vmatprep.subr.bf16.mxu0 0
    %1070 = vmatpush1.bf16.msra.mxu0 0
    %1071 = vmatprep.subr.bf16.mxu0 0
    %1072 = vmatpush1.bf16.msra.mxu0 0
    %1073 = vmatprep.subr.bf16.mxu0 0
    %1074 = vmatpush1.bf16.msra.mxu0 0
    %1075 = vmatprep.subr.bf16.mxu0 0
    %1076 = vmatpush1.bf16.msra.mxu0 0
    %1077 = vmatprep.subr.bf16.mxu0 0
    %1078 = vmatpush1.bf16.msra.mxu0 0
    %1079 = vmatprep.subr.bf16.mxu0 0
    %1080 = vmatpush1.bf16.msra.mxu0 0
    %1081 = vmatprep.subr.bf16.mxu0 0
    %1082 = vmatpush1.bf16.msra.mxu0 0
    %1083 = vmatprep.mubr.bf16.mxu0 0
    %1084 = vmatmul.mubr.bf16.gmra.mrb[0].mxu0 %v1046
    %v1085 = vpop.f32.mrb[0].mxu0
    %v1086 = vadd.f32 %v1025, %v1085
    %v1087 = vpop.f32.mrb[0].mxu0
    %v1088 = vpop.f32.mrb[0].mxu0
    %v1089 = vadd.f32 %v1028, %v1088
    %v1090 = vpop.f32.mrb[0].mxu0
    %1091 = vmatprep.mubr.bf16.mxu0 0
    %1092 = vmatmul.mubr.bf16.gmra.mrb[0].mxu0 %v1049
    %v1093 = vpop.f32.mrb[0].mxu0
    %v1094 = vadd.f32 %v1033, %v1093
    %v1095 = vpop.f32.mrb[0].mxu0
    %v1096 = vpop.f32.mrb[0].mxu0
    %v1097 = vadd.f32 %v1036, %v1096
    %v1098 = vpop.f32.mrb[0].mxu0
    %1099 = vdwg.mxu0
    %v1100 = vrot.slane %v953, 1
    %v1101 = vrot.slane %v954, 1
    %v1102 = vrot.slane %v955, 1
    %v1103 = vrot.slane %v956, 1
    %v1104 = vsel %vm250, %v1102, %v1103
    %v1105 = vsel %vm250, %v1101, %v1102
    %v1106 = vsel %vm250, %v1100, %v1101
    %v1107 = vsel %vm250, %v1103, %v1100
    %v1108 = vmul.f32 %v1106, %v257
    %v1109 = vmul.f32 %v1105, %v261
    %v1110 = vmul.f32 %v1104, %v265
    %v1111 = vmul.f32 %v1107, %v269
    %v1112 = vld [vmem:[%s17 + $0x10] sm:$0xf]
    %v1113 = vld [vmem:[%s17 + $0x14] sm:$0xf]
    %v1114 = vpack.c.bf16 %v1109, %v1108
    %v1115 = vpack.c.bf16 %v1111, %v1110
    %v1118 = vunpack.c.l.b16 %v1112
    %v1119 = vunpack.c.l.b16 %v1113
    %v1120 = vpack.c.b16 %v1119, %v1118
    %v1123 = vsel %vm983, %v1114, 0
    %v1126 = vsel %vm983, %v1115, 0
    %1128 = vmatprep.subr.bf16.mxu0 0
    %1129 = vmatpush1.bf16.msra.mxu0 %v1120
    %1130 = vmatprep.subr.bf16.mxu0 0
    %1131 = vmatpush1.bf16.msra.mxu0 0
    %1132 = vmatprep.subr.bf16.mxu0 0
    %1133 = vmatpush1.bf16.msra.mxu0 0
    %1134 = vmatprep.subr.bf16.mxu0 0
    %1135 = vmatpush1.bf16.msra.mxu0 0
    %1136 = vmatprep.subr.bf16.mxu0 0
    %1137 = vmatpush1.bf16.msra.mxu0 0
    %1138 = vmatprep.subr.bf16.mxu0 0
    %1139 = vmatpush1.bf16.msra.mxu0 0
    %1140 = vmatprep.subr.bf16.mxu0 0
    %1141 = vmatpush1.bf16.msra.mxu0 0
    %1142 = vmatprep.subr.bf16.mxu0 0
    %1143 = vmatpush1.bf16.msra.mxu0 0
    %1144 = vmatprep.subr.bf16.mxu0 0
    %1145 = vmatpush1.bf16.msra.mxu0 0
    %1146 = vmatprep.subr.bf16.mxu0 0
    %1147 = vmatpush1.bf16.msra.mxu0 0
    %1148 = vmatprep.subr.bf16.mxu0 0
    %1149 = vmatpush1.bf16.msra.mxu0 0
    %1150 = vmatprep.subr.bf16.mxu0 0
    %1151 = vmatpush1.bf16.msra.mxu0 0
    %1152 = vmatprep.subr.bf16.mxu0 0
    %1153 = vmatpush1.bf16.msra.mxu0 0
    %1154 = vmatprep.subr.bf16.mxu0 0
    %1155 = vmatpush1.bf16.msra.mxu0 0
    %1156 = vmatprep.subr.bf16.mxu0 0
    %1157 = vmatpush1.bf16.msra.mxu0 0
    %1158 = vmatprep.subr.bf16.mxu0 0
    %1159 = vmatpush1.bf16.msra.mxu0 0
    %1160 = vmatprep.mubr.bf16.mxu0 0
    %1161 = vmatmul.mubr.bf16.gmra.mrb[0].mxu0 %v1123
    %v1162 = vpop.f32.mrb[0].mxu0
    %v1163 = vadd.f32 0.0, %v1162
    %v1164 = vpop.f32.mrb[0].mxu0
    %v1165 = vpop.f32.mrb[0].mxu0
    %v1166 = vadd.f32 0.0, %v1165
    %v1167 = vpop.f32.mrb[0].mxu0
    %1168 = vmatprep.mubr.bf16.mxu0 0
    %1169 = vmatmul.mubr.bf16.gmra.mrb[0].mxu0 %v1126
    %v1170 = vpop.f32.mrb[0].mxu0
    %v1171 = vadd.f32 0.0, %v1170
    %v1172 = vpop.f32.mrb[0].mxu0
    %v1173 = vpop.f32.mrb[0].mxu0
    %v1174 = vadd.f32 0.0, %v1173
    %v1175 = vpop.f32.mrb[0].mxu0
    %1176 = vdwg.mxu0
    %v1177 = vadd.f32 %v1086, %v1163
    %v1178 = vadd.f32 %v1089, %v1166
    %v1179 = vadd.f32 %v1094, %v1171
    %v1180 = vadd.f32 %v1097, %v1174
    %v1181 = vld [vmem:[%s18] sm:$0x1]
    %v1183 = vlaneseq
    %v1184 = vshrl.u32 %v1183, 7
    %v1185 = vsub.s32 0, %v1184
    %v1186 = vrot.slane %v1181, %v1185
    %v1188 = vmul.f32 %v1177, %v1186
    %v1189 = vmul.f32 %v1178, %v1186
    %v1190 = vmul.f32 %v1179, %v1186
    %v1191 = vmul.f32 %v1180, %v1186
    %v1192 = vld [vmem:[%s19] sm:$0x1]
    %v1194 = vlaneseq
    %v1195 = vshrl.u32 %v1194, 7
    %v1196 = vsub.s32 0, %v1195
    %v1197 = vrot.slane %v1192, %v1196
    %v1199 = vadd.f32 %v1188, %v1197
    %v1200 = vadd.f32 %v1189, %v1197
    %v1201 = vadd.f32 %v1190, %v1197
    %v1202 = vadd.f32 %v1191, %v1197
    %v1203 = vadd.f32 %v1199, %v953
    %v1204 = vadd.f32 %v1200, %v954
    %v1205 = vadd.f32 %v1201, %v955
    %v1206 = vadd.f32 %v1202, %v956
    %v1207 = vmax.f32 %v1203, 0.0
    %v1208 = vmax.f32 %v1204, 0.0
    %v1209 = vmax.f32 %v1205, 0.0
    %v1210 = vmax.f32 %v1206, 0.0
    %v1211 = vld [vmem:[%s2] sm:$0xff]
    %v1212 = vld [vmem:[%s2 + $0x8] sm:$0xff]
    %v1213 = vld [vmem:[%s2 + $0x10] sm:$0xff]
    %v1214 = vld [vmem:[%s2 + $0x18] sm:$0xff]
    %v1216 = vsel %vm983, %v1207, 0
    %v1219 = vsel %vm983, %v1208, 0
    %v1222 = vsel %vm983, %v1209, 0
    %v1225 = vsel %vm983, %v1210, 0
    %1227 = vmatprep.subr.mxu0 %v1212
    %1228 = vmatpush1.msra.mxu0 %v1211
    %1229 = vmatprep.subr.mxu0 %v1214
    %1230 = vmatpush1.msra.mxu0 %v1213
    %1231 = vmatprep.subr.mxu0 0.0
    %1232 = vmatpush1.msra.mxu0 0.0
    %1233 = vmatprep.subr.mxu0 0.0
    %1234 = vmatpush1.msra.mxu0 0.0
    %1235 = vmatprep.subr.mxu0 0.0
    %1236 = vmatpush1.msra.mxu0 0.0
    %1237 = vmatprep.subr.mxu0 0.0
    %1238 = vmatpush1.msra.mxu0 0.0
    %1239 = vmatprep.subr.mxu0 0.0
    %1240 = vmatpush1.msra.mxu0 0.0
    %1241 = vmatprep.subr.mxu0 0.0
    %1242 = vmatpush1.msra.mxu0 0.0
    %1243 = vmatprep.subr.mxu0 0.0
    %1244 = vmatpush1.msra.mxu0 0.0
    %1245 = vmatprep.subr.mxu0 0.0
    %1246 = vmatpush1.msra.mxu0 0.0
    %1247 = vmatprep.subr.mxu0 0.0
    %1248 = vmatpush1.msra.mxu0 0.0
    %1249 = vmatprep.subr.mxu0 0.0
    %1250 = vmatpush1.msra.mxu0 0.0
    %1251 = vmatprep.subr.mxu0 0.0
    %1252 = vmatpush1.msra.mxu0 0.0
    %1253 = vmatprep.subr.mxu0 0.0
    %1254 = vmatpush1.msra.mxu0 0.0
    %1255 = vmatprep.subr.mxu0 0.0
    %1256 = vmatpush1.msra.mxu0 0.0
    %1257 = vmatprep.subr.mxu0 0.0
    %1258 = vmatpush1.msra.mxu0 0.0
    %1259 = vmatprep.subr.mxu0 0.0
    %1260 = vmatpush1.msra.mxu0 0.0
    %1261 = vmatprep.subr.mxu0 0.0
    %1262 = vmatpush1.msra.mxu0 0.0
    %1263 = vmatprep.subr.mxu0 0.0
    %1264 = vmatpush1.msra.mxu0 0.0
    %1265 = vmatprep.subr.mxu0 0.0
    %1266 = vmatpush1.msra.mxu0 0.0
    %1267 = vmatprep.subr.mxu0 0.0
    %1268 = vmatpush1.msra.mxu0 0.0
    %1269 = vmatprep.subr.mxu0 0.0
    %1270 = vmatpush1.msra.mxu0 0.0
    %1271 = vmatprep.subr.mxu0 0.0
    %1272 = vmatpush1.msra.mxu0 0.0
    %1273 = vmatprep.subr.mxu0 0.0
    %1274 = vmatpush1.msra.mxu0 0.0
    %1275 = vmatprep.subr.mxu0 0.0
    %1276 = vmatpush1.msra.mxu0 0.0
    %1277 = vmatprep.subr.mxu0 0.0
    %1278 = vmatpush1.msra.mxu0 0.0
    %1279 = vmatprep.subr.mxu0 0.0
    %1280 = vmatpush1.msra.mxu0 0.0
    %1281 = vmatprep.subr.mxu0 0.0
    %1282 = vmatpush1.msra.mxu0 0.0
    %1283 = vmatprep.subr.mxu0 0.0
    %1284 = vmatpush1.msra.mxu0 0.0
    %1285 = vmatprep.subr.mxu0 0.0
    %1286 = vmatpush1.msra.mxu0 0.0
    %1287 = vmatprep.subr.mxu0 0.0
    %1288 = vmatpush1.msra.mxu0 0.0
    %1289 = vmatprep.subr.mxu0 0.0
    %1290 = vmatpush1.msra.mxu0 0.0
    %1291 = vmatprep.mubr.f32.mxu0 0.0
    %1292 = vmatmul.mubr.f32.gmra.mrb[0].mxu0 %v1216
    %v1293 = vpop.f32.mrb[0].mxu0
    %v1294 = vadd.f32 0.0, %v1293
    %v1295 = vpop.f32.mrb[0].mxu0
    %v1296 = vadd.f32 0.0, %v1295
    %1297 = vmatprep.mubr.f32.mxu0 0.0
    %1298 = vmatmul.mubr.f32.gmra.mrb[0].mxu0 %v1219
    %v1299 = vpop.f32.mrb[0].mxu0
    %v1300 = vadd.f32 0.0, %v1299
    %v1301 = vpop.f32.mrb[0].mxu0
    %v1302 = vadd.f32 0.0, %v1301
    %1303 = vmatprep.mubr.f32.mxu0 0.0
    %1304 = vmatmul.mubr.f32.gmra.mrb[0].mxu0 %v1222
    %v1305 = vpop.f32.mrb[0].mxu0
    %v1306 = vadd.f32 0.0, %v1305
    %v1307 = vpop.f32.mrb[0].mxu0
    %v1308 = vadd.f32 0.0, %v1307
    %1309 = vmatprep.mubr.f32.mxu0 0.0
    %1310 = vmatmul.mubr.f32.gmra.mrb[0].mxu0 %v1225
    %v1311 = vpop.f32.mrb[0].mxu0
    %v1312 = vadd.f32 0.0, %v1311
    %v1313 = vpop.f32.mrb[0].mxu0
    %v1314 = vadd.f32 0.0, %v1313
    %1315 = vdwg.mxu0
    %v1316 = vld [vmem:[%s3] sm:$0xff]
    %v1317 = vld [vmem:[%s3 + $0x8] sm:$0xff]
    %v1318 = vld [vmem:[%s3 + $0x10] sm:$0xff]
    %v1319 = vld [vmem:[%s3 + $0x18] sm:$0xff]
    %v1320 = vld [vmem:[%s3 + $0x20] sm:$0xff]
    %v1321 = vld [vmem:[%s3 + $0x28] sm:$0xff]
    %v1322 = vld [vmem:[%s3 + $0x30] sm:$0xff]
    %v1323 = vld [vmem:[%s3 + $0x38] sm:$0xff]
    %v1324 = vmul.f32 %v1294, %v1316
    %v1325 = vmul.f32 %v1296, %v1317
    %v1326 = vmul.f32 %v1300, %v1318
    %v1327 = vmul.f32 %v1302, %v1319
    %v1328 = vmul.f32 %v1306, %v1320
    %v1329 = vmul.f32 %v1308, %v1321
    %v1330 = vmul.f32 %v1312, %v1322
    %v1331 = vmul.f32 %v1314, %v1323
    %v1332 = vld [vmem:[%s4] sm:$0x3]
    %vm1333 = vcmask 261120
    %v1335 = vsel %vm1333, %v1332, 0
    %1337 = vmatprep.subr.mxu0 %v1325
    %1338 = vmatpush1.msra.mxu0 %v1324
    %1339 = vmatprep.subr.mxu0 %v1327
    %1340 = vmatpush1.msra.mxu0 %v1326
    %1341 = vmatprep.subr.mxu0 %v1329
    %1342 = vmatpush1.msra.mxu0 %v1328
    %1343 = vmatprep.subr.mxu0 %v1331
    %1344 = vmatpush1.msra.mxu0 %v1330
    %1345 = vmatprep.subr.mxu0 0.0
    %1346 = vmatpush1.msra.mxu0 0.0
    %1347 = vmatprep.subr.mxu0 0.0
    %1348 = vmatpush1.msra.mxu0 0.0
    %1349 = vmatprep.subr.mxu0 0.0
    %1350 = vmatpush1.msra.mxu0 0.0
    %1351 = vmatprep.subr.mxu0 0.0
    %1352 = vmatpush1.msra.mxu0 0.0
    %1353 = vmatprep.subr.mxu0 0.0
    %1354 = vmatpush1.msra.mxu0 0.0
    %1355 = vmatprep.subr.mxu0 0.0
    %1356 = vmatpush1.msra.mxu0 0.0
    %1357 = vmatprep.subr.mxu0 0.0
    %1358 = vmatpush1.msra.mxu0 0.0
    %1359 = vmatprep.subr.mxu0 0.0
    %1360 = vmatpush1.msra.mxu0 0.0
    %1361 = vmatprep.subr.mxu0 0.0
    %1362 = vmatpush1.msra.mxu0 0.0
    %1363 = vmatprep.subr.mxu0 0.0
    %1364 = vmatpush1.msra.mxu0 0.0
    %1365 = vmatprep.subr.mxu0 0.0
    %1366 = vmatpush1.msra.mxu0 0.0
    %1367 = vmatprep.subr.mxu0 0.0
    %1368 = vmatpush1.msra.mxu0 0.0
    %1369 = vmatprep.subr.mxu0 0.0
    %1370 = vmatpush1.msra.mxu0 0.0
    %1371 = vmatprep.subr.mxu0 0.0
    %1372 = vmatpush1.msra.mxu0 0.0
    %1373 = vmatprep.subr.mxu0 0.0
    %1374 = vmatpush1.msra.mxu0 0.0
    %1375 = vmatprep.subr.mxu0 0.0
    %1376 = vmatpush1.msra.mxu0 0.0
    %1377 = vmatprep.subr.mxu0 0.0
    %1378 = vmatpush1.msra.mxu0 0.0
    %1379 = vmatprep.subr.mxu0 0.0
    %1380 = vmatpush1.msra.mxu0 0.0
    %1381 = vmatprep.subr.mxu0 0.0
    %1382 = vmatpush1.msra.mxu0 0.0
    %1383 = vmatprep.subr.mxu0 0.0
    %1384 = vmatpush1.msra.mxu0 0.0
    %1385 = vmatprep.subr.mxu0 0.0
    %1386 = vmatpush1.msra.mxu0 0.0
    %1387 = vmatprep.subr.mxu0 0.0
    %1388 = vmatpush1.msra.mxu0 0.0
    %1389 = vmatprep.subr.mxu0 0.0
    %1390 = vmatpush1.msra.mxu0 0.0
    %1391 = vmatprep.subr.mxu0 0.0
    %1392 = vmatpush1.msra.mxu0 0.0
    %1393 = vmatprep.subr.mxu0 0.0
    %1394 = vmatpush1.msra.mxu0 0.0
    %1395 = vmatprep.subr.mxu0 0.0
    %1396 = vmatpush1.msra.mxu0 0.0
    %1397 = vmatprep.subr.mxu0 0.0
    %1398 = vmatpush1.msra.mxu0 0.0
    %1399 = vmatprep.subr.mxu0 0.0
    %1400 = vmatpush1.msra.mxu0 0.0
    %1401 = vmatprep.mubr.f32.mxu0 0.0
    %1402 = vmatmul.mubr.f32.gmra.mrb[0].mxu0 %v1335
    %v1403 = vpop.f32.mrb[0].mxu0
    %v1404 = vadd.f32 0.0, %v1403
    %v1405 = vpop.f32.mrb[0].mxu0
    %v1406 = vadd.f32 0.0, %v1405
    %1407 = vdwg.mxu0
    %v1408 = vpack.c.bf16 %v1404, %v1404
    %v1409 = vpack.c.bf16 %v1406, %v1406
    %v1410 = vld [vmem:[%s20] sm:$0xf]
    %v1411 = vld [vmem:[%s20 + $0x4] sm:$0xf]
    %v1412 = vld [vmem:[%s20 + $0x8] sm:$0xf]
    %v1413 = vld [vmem:[%s20 + $0xc] sm:$0xf]
    %v1414 = vld [vmem:[%s20 + $0x10] sm:$0xf]
    %v1415 = vld [vmem:[%s20 + $0x14] sm:$0xf]
    %v1416 = vld [vmem:[%s20 + $0x18] sm:$0xf]
    %v1417 = vld [vmem:[%s20 + $0x1c] sm:$0xf]
    %v1418 = vld [vmem:[%s20 + $0x20] sm:$0xf]
    %v1419 = vld [vmem:[%s20 + $0x24] sm:$0xf]
    %v1420 = vld [vmem:[%s20 + $0x28] sm:$0xf]
    %v1421 = vld [vmem:[%s20 + $0x2c] sm:$0xf]
    %v1422 = vld [vmem:[%s20 + $0x30] sm:$0xf]
    %v1423 = vld [vmem:[%s20 + $0x34] sm:$0xf]
    %v1424 = vld [vmem:[%s20 + $0x38] sm:$0xf]
    %v1425 = vld [vmem:[%s20 + $0x3c] sm:$0xf]
    %v1426 = vld [vmem:[%s20 + $0x40] sm:$0xf]
    %v1427 = vld [vmem:[%s20 + $0x44] sm:$0xf]
    %v1428 = vld [vmem:[%s20 + $0x48] sm:$0xf]
    %v1429 = vld [vmem:[%s20 + $0x4c] sm:$0xf]
    %v1430 = vld [vmem:[%s20 + $0x50] sm:$0xf]
    %v1431 = vld [vmem:[%s20 + $0x54] sm:$0xf]
    %v1432 = vld [vmem:[%s20 + $0x58] sm:$0xf]
    %v1433 = vld [vmem:[%s20 + $0x5c] sm:$0xf]
    %v1434 = vld [vmem:[%s20 + $0x60] sm:$0xf]
    %v1435 = vld [vmem:[%s20 + $0x64] sm:$0xf]
    %v1436 = vld [vmem:[%s20 + $0x68] sm:$0xf]
    %v1437 = vld [vmem:[%s20 + $0x6c] sm:$0xf]
    %v1438 = vld [vmem:[%s20 + $0x70] sm:$0xf]
    %v1439 = vld [vmem:[%s20 + $0x74] sm:$0xf]
    %v1440 = vld [vmem:[%s20 + $0x78] sm:$0xf]
    %v1441 = vld [vmem:[%s20 + $0x7c] sm:$0xf]
    %v1442 = vld [vmem:[%s21] sm:$0x1]
    %v1444 = vlaneseq
    %v1445 = vshrl.u32 %v1444, 7
    %v1446 = vsub.s32 0, %v1445
    %v1447 = vrot.slane %v1442, %v1446
    %v1481 = vunpack.c.l.b16 %v1410
    %v1482 = vunpack.c.l.b16 %v1411
    %v1483 = vunpack.c.l.b16 %v1412
    %v1484 = vunpack.c.l.b16 %v1413
    %v1485 = vunpack.c.l.b16 %v1414
    %v1486 = vunpack.c.l.b16 %v1415
    %v1487 = vunpack.c.l.b16 %v1416
    %v1488 = vunpack.c.l.b16 %v1417
    %v1489 = vunpack.c.l.b16 %v1418
    %v1490 = vunpack.c.l.b16 %v1419
    %v1491 = vunpack.c.l.b16 %v1420
    %v1492 = vunpack.c.l.b16 %v1421
    %v1493 = vunpack.c.l.b16 %v1422
    %v1494 = vunpack.c.l.b16 %v1423
    %v1495 = vunpack.c.l.b16 %v1424
    %v1496 = vunpack.c.l.b16 %v1425
    %v1497 = vunpack.c.l.b16 %v1426
    %v1498 = vunpack.c.l.b16 %v1427
    %v1499 = vunpack.c.l.b16 %v1428
    %v1500 = vunpack.c.l.b16 %v1429
    %v1501 = vunpack.c.l.b16 %v1430
    %v1502 = vunpack.c.l.b16 %v1431
    %v1503 = vunpack.c.l.b16 %v1432
    %v1504 = vunpack.c.l.b16 %v1433
    %v1505 = vunpack.c.l.b16 %v1434
    %v1506 = vunpack.c.l.b16 %v1435
    %v1507 = vunpack.c.l.b16 %v1436
    %v1508 = vunpack.c.l.b16 %v1437
    %v1509 = vunpack.c.l.b16 %v1438
    %v1510 = vunpack.c.l.b16 %v1439
    %v1511 = vunpack.c.l.b16 %v1440
    %v1512 = vunpack.c.l.b16 %v1441
    %v1513 = vpack.c.b16 %v1482, %v1481
    %v1514 = vpack.c.b16 %v1484, %v1483
    %v1515 = vpack.c.b16 %v1486, %v1485
    %v1516 = vpack.c.b16 %v1488, %v1487
    %v1517 = vpack.c.b16 %v1490, %v1489
    %v1518 = vpack.c.b16 %v1492, %v1491
    %v1519 = vpack.c.b16 %v1494, %v1493
    %v1520 = vpack.c.b16 %v1496, %v1495
    %v1521 = vpack.c.b16 %v1498, %v1497
    %v1522 = vpack.c.b16 %v1500, %v1499
    %v1523 = vpack.c.b16 %v1502, %v1501
    %v1524 = vpack.c.b16 %v1504, %v1503
    %v1525 = vpack.c.b16 %v1506, %v1505
    %v1526 = vpack.c.b16 %v1508, %v1507
    %v1527 = vpack.c.b16 %v1510, %v1509
    %v1528 = vpack.c.b16 %v1512, %v1511
    %1545 = vmatprep.subr.bf16.mxu0 0
    %1546 = vmatpush1.bf16.msra.mxu0 %v1513
    %1547 = vmatprep.subr.bf16.mxu0 0
    %1548 = vmatpush1.bf16.msra.mxu0 %v1514
    %1549 = vmatprep.subr.bf16.mxu0 0
    %1550 = vmatpush1.bf16.msra.mxu0 %v1515
    %1551 = vmatprep.subr.bf16.mxu0 0
    %1552 = vmatpush1.bf16.msra.mxu0 %v1516
    %1553 = vmatprep.subr.bf16.mxu0 0
    %1554 = vmatpush1.bf16.msra.mxu0 %v1517
    %1555 = vmatprep.subr.bf16.mxu0 0
    %1556 = vmatpush1.bf16.msra.mxu0 %v1518
    %1557 = vmatprep.subr.bf16.mxu0 0
    %1558 = vmatpush1.bf16.msra.mxu0 %v1519
    %1559 = vmatprep.subr.bf16.mxu0 0
    %1560 = vmatpush1.bf16.msra.mxu0 %v1520
    %1561 = vmatprep.subr.bf16.mxu0 0
    %1562 = vmatpush1.bf16.msra.mxu0 %v1521
    %1563 = vmatprep.subr.bf16.mxu0 0
    %1564 = vmatpush1.bf16.msra.mxu0 %v1522
    %1565 = vmatprep.subr.bf16.mxu0 0
    %1566 = vmatpush1.bf16.msra.mxu0 %v1523
    %1567 = vmatprep.subr.bf16.mxu0 0
    %1568 = vmatpush1.bf16.msra.mxu0 %v1524
    %1569 = vmatprep.subr.bf16.mxu0 0
    %1570 = vmatpush1.bf16.msra.mxu0 %v1525
    %1571 = vmatprep.subr.bf16.mxu0 0
    %1572 = vmatpush1.bf16.msra.mxu0 %v1526
    %1573 = vmatprep.subr.bf16.mxu0 0
    %1574 = vmatpush1.bf16.msra.mxu0 %v1527
    %1575 = vmatprep.subr.bf16.mxu0 0
    %1576 = vmatpush1.bf16.msra.mxu0 %v1528
    %1577 = vmatprep.mubr.bf16.mxu0 %v1409
    %1578 = vmatmul.mubr.bf16.gmra.mrb[0].mxu0 %v1408
    %v1579 = vpop.f32.mrb[0].mxu0
    %v1580 = vadd.f32 %v1447, %v1579
    %v1581 = vpop.f32.mrb[0].mxu0
    %v1582 = vpop.f32.mrb[0].mxu0
    %v1583 = vpop.f32.mrb[0].mxu0
    %1584 = vdwg.mxu0
    %vm1585 = vcmask 33792
    %1586 = vst.msk [vmem:[#allocation2] sm:$0x3] %vm1585, %v1580
    // Predicated region
    $region90: #{_forward.1} parent=1 // pred_check
      _
    $region91: #{_forward.1} parent=1 // pred_check_branch
      %1588 = sbr.rel (0) target = $region93
    $region92: #{_forward.1} parent=1 // pred_region
      %s1590 = ssub.s32 32, 32
      %1591 = vsyncadd [#allocation3], %s1590
      %s1593 = sshll.u32 [#allocation2], 4
      %s1594 = int_to_ptr.vmem [resolvable:$true] %s1593
      %1596 = dma.vmem_to_hbm [thread:$0]  %s1594, 32, %s22, [#allocation3]
    $region93: #{_forward.1} parent=1 // pred_fallthru
      _
    // Predicated region
    $region94: #{_forward.1} parent=1 // pred_check
      _
    $region95: #{_forward.1} parent=1 // pred_check_branch
      %1598 = sbr.rel (0) target = $region97
    $region96: #{_forward.1} parent=1 // pred_region
      %1599 = dma.done [#allocation3], 32
    $region97: #{_forward.1} parent=1 // pred_fallthru
      _
    %1600 = vsyncpa [#allocation3], 1

</llo_original>
